<compile_context>
chip_gen: v7x
topology: tpu7x:2x2x1
jax: 0.10.0
libtpu: 0.0.40
codegen_flags: <defaults>
</compile_context>

<pallas_src>
import numpy as np
import jax
import jax.numpy as jnp
from jax import lax
from jax.experimental import pallas as pl
from jax.experimental.pallas import tpu as pltpu


def basic_block_kernel(x_ref, w1_ref, t1_ref, w2_ref, t2_ref, out_ref,
                       xpad_ref, o1p_ref):
    """Fused BasicBlock forward for BT batch elements (grid over batch tiles).

    x_ref   : (BT, H, W*C)    bf16  lane-dense activation slab (unpadded)
    w1_ref  : (3*W*C, W*P)    bf16  banded conv1 weights, BN1 scale folded in
    t1_ref  : (1, W*P)        f32   folded BN1 shift (tiled per w)
    w2_ref  : (3*W*P, W*P)    bf16  banded conv2 weights, BN2 scale folded in
    t2_ref  : (1, W*P)        f32   folded BN2 shift
    out_ref : (BT, H, W*P)    bf16  output slab
    xpad_ref: (BT, H+2, W*C)  bf16  scratch: vertically zero-padded input
    o1p_ref : (BT, H+2, W*P)  bf16  scratch: vertically zero-padded conv1 out
    """
    BT, H, WC = x_ref.shape
    WP = out_ref.shape[-1]
    Hp = H + 2
    M = BT * H

    x = x_ref[...]                                         # (BT, H, WC) bf16

    # Stage x with a 1-row vertical zero halo per image (the horizontal zero
    # padding lives in the banded weights).  Halo rows are re-zeroed every
    # grid step: scratch persists across iterations and each megacore
    # TensorCore owns its own copy -- do NOT gate this on program_id == 0.
    xpad_ref[:, 0:1, :] = jnp.zeros((BT, 1, WC), jnp.bfloat16)
    xpad_ref[:, Hp - 1:Hp, :] = jnp.zeros((BT, 1, WC), jnp.bfloat16)
    xpad_ref[:, 1:H + 1, :] = x

    # ---- conv1 (BN1 scale pre-folded): one MXU contraction, M=BT*H, K=3*W*C.
    # The three kh row slabs are concatenated along K; the center slab is x.
    lhs1 = jnp.concatenate(
        [xpad_ref[:, 0:H, :], x, xpad_ref[:, 2:Hp, :]], axis=-1
    ).reshape(M, 3 * WC)
    acc1 = jnp.dot(lhs1, w1_ref[...], preferred_element_type=jnp.float32)

    # BN1 shift + ReLU (QuantizationActivation at a_bits=32 is the identity).
    out1 = jnp.maximum(acc1 + t1_ref[...], 0.0)
    out1_bf = out1.astype(jnp.bfloat16).reshape(BT, H, WP)

    # Stage conv1 output (bf16) with the same vertical halo.
    o1p_ref[:, 0:1, :] = jnp.zeros((BT, 1, WP), jnp.bfloat16)
    o1p_ref[:, Hp - 1:Hp, :] = jnp.zeros((BT, 1, WP), jnp.bfloat16)
    o1p_ref[:, 1:H + 1, :] = out1_bf

    # ---- conv2 (BN2 scale pre-folded): single M=BT*H, K=3*W*P contraction.
    lhs2 = jnp.concatenate(
        [o1p_ref[:, 0:H, :], out1_bf, o1p_ref[:, 2:Hp, :]], axis=-1
    ).reshape(M, 3 * WP)
    acc2 = jnp.dot(lhs2, w2_ref[...], preferred_element_type=jnp.float32)

    # ---- BN2 shift + residual + ReLU.  Residual is the bf16 input upcast to
    # f32 (C == P and identical (w, c) lane layout).
    residual = x.reshape(M, WC).astype(jnp.float32)
    out2 = jnp.maximum(acc2 + t2_ref[...] + residual, 0.0)
    out_ref[...] = out2.reshape(BT, H, WP).astype(out_ref.dtype)


def _banded_conv_weights(w_oihw, W):
    """Fold a 3x3 / stride-1 / pad-1 conv into 3 banded matrices (one per kh).

    band[kh, w_in*Cin + c, w_out*Cout + p] = w[p, c, kh, w_in - w_out + 1]
    when |w_in - w_out| <= 1, else 0.  Missing blocks at the band edges encode
    the horizontal zero padding, so the kernel never materializes padded
    columns or per-tap windows.  Returns (3, W*Cin, W*Cout) in f32.
    """
    cout, cin = w_oihw.shape[0], w_oihw.shape[1]
    wk = jnp.transpose(w_oihw, (2, 3, 1, 0)).astype(jnp.float32)  # (kh,kw,ci,co)
    w_in = jnp.arange(W)[:, None]
    w_out = jnp.arange(W)[None, :]
    kw = w_in - w_out + 1                                 # (W, W)
    valid = (kw >= 0) & (kw <= 2)
    full = wk[:, jnp.clip(kw, 0, 2), :, :]                # (3, W, W, ci, co)
    full = full * valid[None, :, :, None, None].astype(jnp.float32)
    return jnp.transpose(full, (0, 1, 3, 2, 4)).reshape(3, W * cin, W * cout)


def _fused_weights_and_shift(w_oihw, bn, W, eps):
    """Banded weights with the BN scale folded into output columns (fold in
    f32, then bf16 cast) plus the remaining BN shift, tiled per w position."""
    gamma, beta, mean, var = bn
    cout, cin = w_oihw.shape[0], w_oihw.shape[1]
    scale = (gamma / jnp.sqrt(var + eps)).astype(jnp.float32)     # (cout,)
    shift = (beta - mean * scale).astype(jnp.float32)             # (cout,)
    scale_cols = jnp.tile(scale, W)                               # (W*cout,)
    shift_cols = jnp.tile(shift, W).reshape(1, W * cout)
    band = _banded_conv_weights(w_oihw, W) * scale_cols[None, None, :]
    w_fused = band.reshape(3 * W * cin, W * cout).astype(jnp.bfloat16)
    return w_fused, shift_cols


def _pick_batch_tile(B, H, target_m=256):
    """Largest batch tile BT (divisor of B) with BT*H <= target_m, preferring
    at least 2 grid steps when the batch allows it (pipeline overlap and a
    megacore split on v7x).  target_m=256 fills the 256-tall v6e/v7x MXU and
    is two clean passes of v5e's 128x128 MXU."""
    divisors = [d for d in range(1, B + 1) if B % d == 0]
    feasible = [d for d in divisors if d * H <= target_m] or [1]
    multi_step = [d for d in feasible if B // d >= 2]
    return max(multi_step or feasible)


def _vmem_limit_bytes(BT, H, WC, WP):
    """Tight, generation-safe VMEM request: actual block + weight + scratch
    footprint with generous headroom, capped at 32 MiB (well below v7x's
    64 MiB physical VMEM)."""
    Hp = H + 2
    bf16, f32 = 2, 4
    blocks = BT * H * WC * bf16 + BT * H * WP * bf16           # x + out block
    weights = (3 * WC * WP + 3 * WP * WP) * bf16 + 2 * WP * f32
    scratch = BT * Hp * (WC + WP) * bf16
    need = 2 * (blocks + weights) + scratch                    # double-buffered
    return int(min(max(8 * need, 16 * 1024 * 1024), 32 * 1024 * 1024))


def basic_block_slab(x_slab, w1, bn1, w2, bn2, *, W, eps=1e-5, target_m=256):
    """BasicBlock forward on a lane-dense activation slab.

    x_slab: (B, H, W*C) -- NHWC with (W, C) flattened into the lane axis.
    Returns a (B, H, W*P) bf16 slab so consecutive blocks chain without NCHW
    round trips (NCHW<->slab conversion should happen once per network).
    """
    B, H, WC = x_slab.shape
    C = WC // W
    if W * C != WC:
        raise ValueError("slab minor dim must be W*C")
    P, Cin = w1.shape[0], w1.shape[1]
    if Cin != C or w2.shape[0] != P or w2.shape[1] != P:
        raise ValueError("weight shapes inconsistent with input slab")
    if C != P:
        raise ValueError("this kernel covers downsample=None blocks "
                         "(in_planes == planes, stride == 1) only")
    WP = W * P
    Hp = H + 2

    w1_fused, t1 = _fused_weights_and_shift(w1, bn1, W, eps)   # (3*WC, WP)
    w2_fused, t2 = _fused_weights_and_shift(w2, bn2, W, eps)   # (3*WP, WP)

    BT = _pick_batch_tile(B, H, target_m)
    grid = (B // BT,)

    # TODO(synk): for deep ResNet stages, single-buffer the weight/shift inputs
    # (pipeline_mode=pl.Buffered(1)) and switch to a K=9*C im2col path once
    # W*C exceeds ~1-1.5k (banded weights grow as (W*C)^2 and stop fitting
    # v7x's 64 MiB VMEM); both are no-ops at W*C = 128.
    out = pl.pallas_call(
        basic_block_kernel,
        out_shape=jax.ShapeDtypeStruct((B, H, WP), jnp.bfloat16),
        grid_spec=pltpu.PrefetchScalarGridSpec(
            num_scalar_prefetch=0,
            grid=grid,
            in_specs=[
                pl.BlockSpec((BT, H, WC), lambda b: (b, 0, 0)),
                pl.BlockSpec((3 * WC, WP), lambda b: (0, 0)),
                pl.BlockSpec((1, WP), lambda b: (0, 0)),
                pl.BlockSpec((3 * WP, WP), lambda b: (0, 0)),
                pl.BlockSpec((1, WP), lambda b: (0, 0)),
            ],
            out_specs=pl.BlockSpec((BT, H, WP), lambda b: (b, 0, 0)),
            scratch_shapes=[
                pltpu.VMEM((BT, Hp, WC), jnp.bfloat16),
                pltpu.VMEM((BT, Hp, WP), jnp.bfloat16),
            ],
        ),
        compiler_params=pltpu.CompilerParams(
            dimension_semantics=("parallel",),
            vmem_limit_bytes=_vmem_limit_bytes(BT, H, WC, WP),
        ),
    )(x_slab.astype(jnp.bfloat16), w1_fused, t1, w2_fused, t2)
    return out


def nchw_to_slab(x_nchw):
    B, C, H, W = x_nchw.shape
    return jnp.transpose(x_nchw, (0, 2, 3, 1)).reshape(B, H, W * C)


def slab_to_nchw(x_slab, W, C):
    B, H, _ = x_slab.shape
    return jnp.transpose(x_slab.reshape(B, H, W, C), (0, 3, 1, 2))


def basic_block_pallas(x_nchw, w1, bn1, w2, bn2, eps=1e-5):
    """NCHW convenience wrapper (module-equivalent interface) for one block.
    In a full network, convert NCHW->slab once and chain basic_block_slab
    calls instead of paying this layout plumbing per block."""
    B, C, H, W = x_nchw.shape
    out_slab = basic_block_slab(nchw_to_slab(x_nchw), w1, bn1, w2, bn2,
                                W=W, eps=eps)
    return slab_to_nchw(out_slab, W, w1.shape[0]).astype(x_nchw.dtype)


def basic_block_ref(x, w1, bn1, w2, bn2, eps=1e-5):
    """Pure-JAX f32 reference matching PyTorch eval-mode BasicBlock."""
    dn = ("NCHW", "OIHW", "NCHW")

    def bn(y, g, b, m, v):
        sh = (1, -1, 1, 1)
        return (y - m.reshape(sh)) / jnp.sqrt(v.reshape(sh) + eps) * g.reshape(sh) + b.reshape(sh)

    out = lax.conv_general_dilated(x, w1, (1, 1), ((1, 1), (1, 1)), dimension_numbers=dn)
    out = jnp.maximum(bn(out, *bn1), 0.0)
    out = lax.conv_general_dilated(out, w2, (1, 1), ((1, 1), (1, 1)), dimension_numbers=dn)
    out = bn(out, *bn2) + x
    return jnp.maximum(out, 0.0)


if __name__ == "__main__":
    # in_planes = planes = 8, stride = 1, downsample = None; W*C = 128 so the
    # slab minor dim is exactly one lane tile.  B = 8 exercises batch tiling
    # (BT = 4 -> M = 64 rows per MXU pass, 2 grid steps).
    B, C, H, W = 8, 8, 16, 16
    P = C

    key = jax.random.PRNGKey(0)
    ks = jax.random.split(key, 11)
    x = jax.random.normal(ks[0], (B, C, H, W), jnp.float32)
    w1 = jax.random.normal(ks[1], (P, C, 3, 3), jnp.float32) * 0.1
    w2 = jax.random.normal(ks[2], (P, P, 3, 3), jnp.float32) * 0.1
    bn1 = (jax.random.uniform(ks[3], (P,), jnp.float32, 0.5, 1.5),   # gamma
           jax.random.normal(ks[4], (P,), jnp.float32) * 0.1,        # beta
           jax.random.normal(ks[5], (P,), jnp.float32) * 0.1,        # running_mean
           jax.random.uniform(ks[6], (P,), jnp.float32, 0.5, 1.5))   # running_var
    bn2 = (jax.random.uniform(ks[7], (P,), jnp.float32, 0.5, 1.5),
           jax.random.normal(ks[8], (P,), jnp.float32) * 0.1,
           jax.random.normal(ks[9], (P,), jnp.float32) * 0.1,
           jax.random.uniform(ks[10], (P,), jnp.float32, 0.5, 1.5))

    out = jax.block_until_ready(basic_block_pallas(x, w1, bn1, w2, bn2))
    ref = jax.block_until_ready(basic_block_ref(x, w1, bn1, w2, bn2))

    # bf16 activations / weights / staged intermediate (per perf review) vs a
    # pure-f32 reference -> loosened tolerance (intentional precision trade).
    np.testing.assert_allclose(np.asarray(out), np.asarray(ref),
                               rtol=5e-2, atol=5e-2)
    print("KERNEL_OK")
</pallas_src>

<mosaic_0001>
module attributes {stable_mosaic.version = 11 : i64} {
  func.func @basic_block_kernel(%arg0: i32, %arg1: memref<4x16x128xbf16, #tpu.memory_space<vmem>>, %arg2: memref<384x128xbf16, #tpu.memory_space<vmem>>, %arg3: memref<1x128xf32, #tpu.memory_space<vmem>>, %arg4: memref<384x128xbf16, #tpu.memory_space<vmem>>, %arg5: memref<1x128xf32, #tpu.memory_space<vmem>>, %arg6: memref<4x16x128xbf16, #tpu.memory_space<vmem>>, %arg7: memref<4x18x128xbf16, #tpu.memory_space<vmem>>, %arg8: memref<4x18x128xbf16, #tpu.memory_space<vmem>>) attributes {dimension_semantics = [#tpu.dimension_semantics<parallel>], iteration_bounds = array<i64: 2>, scalar_prefetch = 0 : i64, scratch_operands = 2 : i64, tpu.core_type = #tpu.core_type<tc>, window_params = [{transform_indices = @transform_0, window_bounds = array<i64: 4, 16, 128>}, {pipeline_mode = #tpu.pipeline_mode<synchronous>, transform_indices = @transform_1, window_bounds = array<i64: 384, 128>}, {pipeline_mode = #tpu.pipeline_mode<synchronous>, transform_indices = @transform_2, window_bounds = array<i64: 1, 128>}, {pipeline_mode = #tpu.pipeline_mode<synchronous>, transform_indices = @transform_3, window_bounds = array<i64: 384, 128>}, {pipeline_mode = #tpu.pipeline_mode<synchronous>, transform_indices = @transform_4, window_bounds = array<i64: 1, 128>}, {transform_indices = @transform_5, window_bounds = array<i64: 4, 16, 128>}]} {
    %c0 = arith.constant 0 : index
    %c0_0 = arith.constant 0 : index
    %c0_1 = arith.constant 0 : index
    %0 = vector.load %arg1[%c0, %c0_0, %c0_1] : memref<4x16x128xbf16, #tpu.memory_space<vmem>>, vector<4x16x128xbf16>
    %cst = arith.constant 0.000000e+00 : bf16
    %1 = vector.broadcast %cst : bf16 to vector<4x1x128xbf16>
    %c0_2 = arith.constant 0 : index
    %c0_3 = arith.constant 0 : index
    %c0_4 = arith.constant 0 : index
    %2 = vector.load %arg7[%c0_2, %c0_3, %c0_4] : memref<4x18x128xbf16, #tpu.memory_space<vmem>>, vector<4x1x128xbf16>
    tpu.vector_store %arg7[%c0_2, %c0_3, %c0_4], %1 {strides = array<i32>} : memref<4x18x128xbf16, #tpu.memory_space<vmem>>, vector<4x1x128xbf16>,
    %cst_5 = arith.constant 0.000000e+00 : bf16
    %3 = vector.broadcast %cst_5 : bf16 to vector<4x1x128xbf16>
    %c0_6 = arith.constant 0 : index
    %c17 = arith.constant 17 : index
    %c0_7 = arith.constant 0 : index
    %4 = vector.load %arg7[%c0_6, %c17, %c0_7] : memref<4x18x128xbf16, #tpu.memory_space<vmem>>, vector<4x1x128xbf16>
    tpu.vector_store %arg7[%c0_6, %c17, %c0_7], %3 {strides = array<i32>} : memref<4x18x128xbf16, #tpu.memory_space<vmem>>, vector<4x1x128xbf16>,
    %c0_8 = arith.constant 0 : index
    %c1 = arith.constant 1 : index
    %c0_9 = arith.constant 0 : index
    %5 = vector.load %arg7[%c0_8, %c1, %c0_9] : memref<4x18x128xbf16, #tpu.memory_space<vmem>>, vector<4x16x128xbf16>
    tpu.vector_store %arg7[%c0_8, %c1, %c0_9], %0 {strides = array<i32>} : memref<4x18x128xbf16, #tpu.memory_space<vmem>>, vector<4x16x128xbf16>,
    %c0_10 = arith.constant 0 : index
    %c0_11 = arith.constant 0 : index
    %c0_12 = arith.constant 0 : index
    %6 = vector.load %arg7[%c0_10, %c0_11, %c0_12] : memref<4x18x128xbf16, #tpu.memory_space<vmem>>, vector<4x16x128xbf16>
    %c0_13 = arith.constant 0 : index
    %c2 = arith.constant 2 : index
    %c0_14 = arith.constant 0 : index
    %7 = vector.load %arg7[%c0_13, %c2, %c0_14] : memref<4x18x128xbf16, #tpu.memory_space<vmem>>, vector<4x16x128xbf16>
    %8 = tpu.concatenate %6, %0, %7 in 2 : vector<4x16x128xbf16>, vector<4x16x128xbf16>, vector<4x16x128xbf16> -> vector<4x16x384xbf16>
    %9 = vector.shape_cast %8 : vector<4x16x384xbf16> to vector<64x384xbf16>
    %c0_15 = arith.constant 0 : index
    %c0_16 = arith.constant 0 : index
    %10 = vector.load %arg2[%c0_15, %c0_16] : memref<384x128xbf16, #tpu.memory_space<vmem>>, vector<384x128xbf16>
    %cst_17 = arith.constant dense<0.000000e+00> : vector<64x128xf32>
    %11 = tpu.matmul %9, %10, %cst_17 {dimension_numbers = #tpu.dot_dimension_numbers<[1], [0], [0], [1], [0, 0, 1, 1], [], []>} : vector<64x384xbf16>, vector<384x128xbf16>, vector<64x128xf32> -> vector<64x128xf32>
    %c0_18 = arith.constant 0 : index
    %c0_19 = arith.constant 0 : index
    %12 = vector.load %arg3[%c0_18, %c0_19] : memref<1x128xf32, #tpu.memory_space<vmem>>, vector<1x128xf32>
    %13 = vector.broadcast %12 : vector<1x128xf32> to vector<64x128xf32>
    %14 = arith.addf %11, %13 : vector<64x128xf32>
    %cst_20 = arith.constant 0.000000e+00 : f32
    %15 = vector.broadcast %cst_20 : f32 to vector<64x128xf32>
    %16 = arith.maximumf %14, %15 : vector<64x128xf32>
    %17 = arith.truncf %16 : vector<64x128xf32> to vector<64x128xbf16>
    %18 = vector.shape_cast %17 : vector<64x128xbf16> to vector<4x16x128xbf16>
    %cst_21 = arith.constant 0.000000e+00 : bf16
    %19 = vector.broadcast %cst_21 : bf16 to vector<4x1x128xbf16>
    %c0_22 = arith.constant 0 : index
    %c0_23 = arith.constant 0 : index
    %c0_24 = arith.constant 0 : index
    %20 = vector.load %arg8[%c0_22, %c0_23, %c0_24] : memref<4x18x128xbf16, #tpu.memory_space<vmem>>, vector<4x1x128xbf16>
    tpu.vector_store %arg8[%c0_22, %c0_23, %c0_24], %19 {strides = array<i32>} : memref<4x18x128xbf16, #tpu.memory_space<vmem>>, vector<4x1x128xbf16>,
    %cst_25 = arith.constant 0.000000e+00 : bf16
    %21 = vector.broadcast %cst_25 : bf16 to vector<4x1x128xbf16>
    %c0_26 = arith.constant 0 : index
    %c17_27 = arith.constant 17 : index
    %c0_28 = arith.constant 0 : index
    %22 = vector.load %arg8[%c0_26, %c17_27, %c0_28] : memref<4x18x128xbf16, #tpu.memory_space<vmem>>, vector<4x1x128xbf16>
    tpu.vector_store %arg8[%c0_26, %c17_27, %c0_28], %21 {strides = array<i32>} : memref<4x18x128xbf16, #tpu.memory_space<vmem>>, vector<4x1x128xbf16>,
    %c0_29 = arith.constant 0 : index
    %c1_30 = arith.constant 1 : index
    %c0_31 = arith.constant 0 : index
    %23 = vector.load %arg8[%c0_29, %c1_30, %c0_31] : memref<4x18x128xbf16, #tpu.memory_space<vmem>>, vector<4x16x128xbf16>
    tpu.vector_store %arg8[%c0_29, %c1_30, %c0_31], %18 {strides = array<i32>} : memref<4x18x128xbf16, #tpu.memory_space<vmem>>, vector<4x16x128xbf16>,
    %c0_32 = arith.constant 0 : index
    %c0_33 = arith.constant 0 : index
    %c0_34 = arith.constant 0 : index
    %24 = vector.load %arg8[%c0_32, %c0_33, %c0_34] : memref<4x18x128xbf16, #tpu.memory_space<vmem>>, vector<4x16x128xbf16>
    %c0_35 = arith.constant 0 : index
    %c2_36 = arith.constant 2 : index
    %c0_37 = arith.constant 0 : index
    %25 = vector.load %arg8[%c0_35, %c2_36, %c0_37] : memref<4x18x128xbf16, #tpu.memory_space<vmem>>, vector<4x16x128xbf16>
    %26 = tpu.concatenate %24, %18, %25 in 2 : vector<4x16x128xbf16>, vector<4x16x128xbf16>, vector<4x16x128xbf16> -> vector<4x16x384xbf16>
    %27 = vector.shape_cast %26 : vector<4x16x384xbf16> to vector<64x384xbf16>
    %c0_38 = arith.constant 0 : index
    %c0_39 = arith.constant 0 : index
    %28 = vector.load %arg4[%c0_38, %c0_39] : memref<384x128xbf16, #tpu.memory_space<vmem>>, vector<384x128xbf16>
    %cst_40 = arith.constant dense<0.000000e+00> : vector<64x128xf32>
    %29 = tpu.matmul %27, %28, %cst_40 {dimension_numbers = #tpu.dot_dimension_numbers<[1], [0], [0], [1], [0, 0, 1, 1], [], []>} : vector<64x384xbf16>, vector<384x128xbf16>, vector<64x128xf32> -> vector<64x128xf32>
    %30 = vector.shape_cast %0 : vector<4x16x128xbf16> to vector<64x128xbf16>
    %31 = arith.extf %30 : vector<64x128xbf16> to vector<64x128xf32>
    %c0_41 = arith.constant 0 : index
    %c0_42 = arith.constant 0 : index
    %32 = vector.load %arg5[%c0_41, %c0_42] : memref<1x128xf32, #tpu.memory_space<vmem>>, vector<1x128xf32>
    %33 = vector.broadcast %32 : vector<1x128xf32> to vector<64x128xf32>
    %34 = arith.addf %29, %33 : vector<64x128xf32>
    %35 = arith.addf %34, %31 : vector<64x128xf32>
    %cst_43 = arith.constant 0.000000e+00 : f32
    %36 = vector.broadcast %cst_43 : f32 to vector<64x128xf32>
    %37 = arith.maximumf %35, %36 : vector<64x128xf32>
    %38 = vector.shape_cast %37 : vector<64x128xf32> to vector<4x16x128xf32>
    %39 = arith.truncf %38 : vector<4x16x128xf32> to vector<4x16x128xbf16>
    %c0_44 = arith.constant 0 : index
    %c0_45 = arith.constant 0 : index
    %c0_46 = arith.constant 0 : index
    %40 = vector.load %arg6[%c0_44, %c0_45, %c0_46] : memref<4x16x128xbf16, #tpu.memory_space<vmem>>, vector<4x16x128xbf16>
    tpu.vector_store %arg6[%c0_44, %c0_45, %c0_46], %39 {strides = array<i32>} : memref<4x16x128xbf16, #tpu.memory_space<vmem>>, vector<4x16x128xbf16>,
    return
  }
  func.func @transform_0(%arg0: i32) -> (i32, i32, i32) {
    %c0_i32 = arith.constant 0 : i32
    %c0_i32_0 = arith.constant 0 : i32
    %c0_i32_1 = arith.constant 0 : i32
    return %arg0, %c0_i32, %c0_i32_0 : i32, i32, i32
  }
  func.func @transform_1(%arg0: i32) -> (i32, i32) {
    %c0_i32 = arith.constant 0 : i32
    %c0_i32_0 = arith.constant 0 : i32
    %c0_i32_1 = arith.constant 0 : i32
    return %c0_i32, %c0_i32_0 : i32, i32
  }
  func.func @transform_2(%arg0: i32) -> (i32, i32) {
    %c0_i32 = arith.constant 0 : i32
    %c0_i32_0 = arith.constant 0 : i32
    %c0_i32_1 = arith.constant 0 : i32
    return %c0_i32, %c0_i32_0 : i32, i32
  }
  func.func @transform_3(%arg0: i32) -> (i32, i32) {
    %c0_i32 = arith.constant 0 : i32
    %c0_i32_0 = arith.constant 0 : i32
    %c0_i32_1 = arith.constant 0 : i32
    return %c0_i32, %c0_i32_0 : i32, i32
  }
  func.func @transform_4(%arg0: i32) -> (i32, i32) {
    %c0_i32 = arith.constant 0 : i32
    %c0_i32_0 = arith.constant 0 : i32
    %c0_i32_1 = arith.constant 0 : i32
    return %c0_i32, %c0_i32_0 : i32, i32
  }
  func.func @transform_5(%arg0: i32) -> (i32, i32, i32) {
    %c0_i32 = arith.constant 0 : i32
    %c0_i32_0 = arith.constant 0 : i32
    %c0_i32_1 = arith.constant 0 : i32
    return %arg0, %c0_i32, %c0_i32_0 : i32, i32, i32
  }
}

</mosaic_0001>

<llo_original>
// kernel: tpu_custom_call.1
$region0: #{tpu_custom_call.1}
  #allocation0 [shape = 'u32[]', space=smem, size = 0x4, offset = 0x4, fixed_abs, tag = 'smem constant byte address 0x4 - core index']
  #allocation1 [shape = 'u32[144,128]{1,0:T(1,128)}', space=vmem, size = 0x12000, scoped, tag = 'internal scratch']
  #allocation2 [shape = 'bf16[4,18,128]{2,1,0:T(8,128)(2,1)}', space=vmem, size = 0x6000, scoped, tag = 'scratch operand']
  #allocation3 [shape = 'bf16[4,18,128]{2,1,0:T(8,128)(2,1)}', space=vmem, size = 0x6000, scoped, tag = 'scratch operand']
  %s0 = inlined_call_operand.hbm [shape: bf16[8,16,128], index: 0, kind: input, shape index: {}]
  %s1 = inlined_call_operand.hbm [shape: bf16[384,128], index: 1, kind: input, shape index: {}]
  %s2 = inlined_call_operand.vmem [shape: f32[1,128], index: 2, kind: input, shape index: {}]
  %s3 = inlined_call_operand.hbm [shape: bf16[384,128], index: 3, kind: input, shape index: {}]
  %s4 = inlined_call_operand.vmem [shape: f32[1,128], index: 4, kind: input, shape index: {}]
  %s5 = inlined_call_operand.hbm [shape: bf16[8,16,128], index: 5, kind: output, shape index: {}]
  %s6 = sld [smem:[#allocation0]]
  $region65: #{tpu_custom_call.1} parent=0
    _
  %s8 = ssub.s32 1, %s6
  %s9 = scalar_select 0, %s8, %s6
  $region1: #{tpu_custom_call.1} parent=0
    #allocation4 [shape = 'u8[32768]{0}', space=vmem, size = 0x8000, scoped, tag = 'input window, operand 0']
    #allocation5 [shape = 's32[2]{0}', space=sflag, size = 0x8, scoped, tag = 'scoped memory for tpu_custom_call.1']
    #allocation6 [shape = 's32[2]{0}', space=sflag, size = 0x8, scoped, tag = 'scoped memory for tpu_custom_call.1']
    #allocation7 [shape = 'u8[98304]{0}', space=vmem, size = 0x18000, scoped, tag = 'input window, operand 1, single buffered']
    #allocation8 [shape = 's32[1]{0}', space=sflag, size = 0x4, scoped, tag = 'scoped memory for tpu_custom_call.1']
    #allocation9 [shape = 'u8[98304]{0}', space=vmem, size = 0x18000, scoped, tag = 'input window, operand 3, single buffered']
    #allocation10 [shape = 'u8[32768]{0}', space=vmem, size = 0x8000, scoped, tag = 'output window, operand 0']
    %10 = vsyncpa [#allocation5], 0
    %s11 = scalar_lea.sflag [#allocation5], 1
    %12 = vsyncpa %s11, 0
    %13 = vsyncpa [#allocation8], 0
    %14 = vsyncpa [#allocation6], 0
    %s15 = scalar_lea.sflag [#allocation6], 1
    %16 = vsyncpa %s15, 0
    loop: start=0, step=1, limit=4
    $region2: #{tpu_custom_call.1} parent=1 // loop_pre_header
      _
    $region3: #{tpu_custom_call.1} parent=1 // loop_header
      %s18 = sphi 0, %s22
      %p19 = scmp.ge.s32.totalorder %s18, 4
      %s28 = sphi 0, %s30
      %s31 = sphi 0, %s28
      %s32 = sphi 0, %s31
      %s48 = sphi 0, %s32
      %s52 = sphi 0, %s52
      %s54 = sphi 0, %s52
      %s55 = sphi 0, %s54
      %s69 = sphi 0, %s55
      %s73 = sphi 0, %s73
      %s75 = sphi 0, %s73
      %s76 = sphi 0, %s75
      %s90 = sphi 0, %s76
      %s94 = sphi 0, %s94
      %s96 = sphi 0, %s94
      %s97 = sphi 0, %s96
      %s111 = sphi 0, %s97
      %s115 = sphi 0, %s115
      %s117 = sphi 0, %s115
      %s118 = sphi 0, %s117
      %s132 = sphi 0, %s118
      %s138 = sphi 0, %s140
      %s141 = sphi 0, %s138
      %s142 = sphi 0, %s141
      %s158 = sphi 0, %s142
    $region4: #{tpu_custom_call.1} parent=1 // loop_header_branch
      %21 = sbr.rel (%p19) target = $region8
    $region5: #{tpu_custom_call.1} parent=1 // loop_body
      %s23 = ssub.s32 %s18, 1
      %s24 = ssub.s32 %s18, 2
      %s25 = sadd.s32 %s18, 1
      %s26 = ssub.s32 %s18, %s25
      %p27 = scmp.eq.s32.totalorder %s26, 0
      %s29 = sadd.s32 %s28, 1
      %s30 = scalar_select %p27, %s28, %s29
      %p33 = pneg %p27
      %p34 = scmp.eq.s32.totalorder %s18, 1
      %p35 = por %p33, %p34
      %p36 = scmp.ne.s32.totalorder %s28, %s31
      %p37 = scmp.eq.s32.totalorder %s18, 0
      %p38 = por %p36, %p37
      %p39 = scmp.ne.s32.totalorder %s28, %s31
      %p40 = scmp.eq.s32.totalorder %s23, 1
      %p41 = por %p39, %p40
      %p42 = scmp.ne.s32.totalorder %s31, %s32
      %p43 = scmp.eq.s32.totalorder %s23, 0
      %p44 = por %p42, %p43
      %p45 = scmp.ne.s32.totalorder %s31, %s32
      %p46 = scmp.eq.s32.totalorder %s24, 1
      %p47 = por %p45, %p46
      %p49 = scmp.ne.s32.totalorder %s32, %s48
      %p50 = scmp.eq.s32.totalorder %s24, 0
      %p51 = por %p49, %p50
      %s53 = sadd.s32 %s52, 1
      %p56 = scmp.eq.s32.totalorder %s18, 1
      %p57 = scmp.ne.s32.totalorder %s52, %s54
      %p58 = scmp.eq.s32.totalorder %s18, 0
      %p59 = por %p57, %p58
      %p60 = scmp.ne.s32.totalorder %s52, %s54
      %p61 = scmp.eq.s32.totalorder %s23, 1
      %p62 = por %p60, %p61
      %p63 = scmp.ne.s32.totalorder %s54, %s55
      %p64 = scmp.eq.s32.totalorder %s23, 0
      %p65 = por %p63, %p64
      %p66 = scmp.ne.s32.totalorder %s54, %s55
      %p67 = scmp.eq.s32.totalorder %s24, 1
      %p68 = por %p66, %p67
      %p70 = scmp.ne.s32.totalorder %s55, %s69
      %p71 = scmp.eq.s32.totalorder %s24, 0
      %p72 = por %p70, %p71
      %s74 = sadd.s32 %s73, 1
      %p77 = scmp.eq.s32.totalorder %s18, 1
      %p78 = scmp.ne.s32.totalorder %s73, %s75
      %p79 = scmp.eq.s32.totalorder %s18, 0
      %p80 = por %p78, %p79
      %p81 = scmp.ne.s32.totalorder %s73, %s75
      %p82 = scmp.eq.s32.totalorder %s23, 1
      %p83 = por %p81, %p82
      %p84 = scmp.ne.s32.totalorder %s75, %s76
      %p85 = scmp.eq.s32.totalorder %s23, 0
      %p86 = por %p84, %p85
      %p87 = scmp.ne.s32.totalorder %s75, %s76
      %p88 = scmp.eq.s32.totalorder %s24, 1
      %p89 = por %p87, %p88
      %p91 = scmp.ne.s32.totalorder %s76, %s90
      %p92 = scmp.eq.s32.totalorder %s24, 0
      %p93 = por %p91, %p92
      %s95 = sadd.s32 %s94, 1
      %p98 = scmp.eq.s32.totalorder %s18, 1
      %p99 = scmp.ne.s32.totalorder %s94, %s96
      %p100 = scmp.eq.s32.totalorder %s18, 0
      %p101 = por %p99, %p100
      %p102 = scmp.ne.s32.totalorder %s94, %s96
      %p103 = scmp.eq.s32.totalorder %s23, 1
      %p104 = por %p102, %p103
      %p105 = scmp.ne.s32.totalorder %s96, %s97
      %p106 = scmp.eq.s32.totalorder %s23, 0
      %p107 = por %p105, %p106
      %p108 = scmp.ne.s32.totalorder %s96, %s97
      %p109 = scmp.eq.s32.totalorder %s24, 1
      %p110 = por %p108, %p109
      %p112 = scmp.ne.s32.totalorder %s97, %s111
      %p113 = scmp.eq.s32.totalorder %s24, 0
      %p114 = por %p112, %p113
      %s116 = sadd.s32 %s115, 1
      %p119 = scmp.eq.s32.totalorder %s18, 1
      %p120 = scmp.ne.s32.totalorder %s115, %s117
      %p121 = scmp.eq.s32.totalorder %s18, 0
      %p122 = por %p120, %p121
      %p123 = scmp.ne.s32.totalorder %s115, %s117
      %p124 = scmp.eq.s32.totalorder %s23, 1
      %p125 = por %p123, %p124
      %p126 = scmp.ne.s32.totalorder %s117, %s118
      %p127 = scmp.eq.s32.totalorder %s23, 0
      %p128 = por %p126, %p127
      %p129 = scmp.ne.s32.totalorder %s117, %s118
      %p130 = scmp.eq.s32.totalorder %s24, 1
      %p131 = por %p129, %p130
      %p133 = scmp.ne.s32.totalorder %s118, %s132
      %p134 = scmp.eq.s32.totalorder %s24, 0
      %p135 = por %p133, %p134
      %s136 = ssub.s32 %s18, %s25
      %p137 = scmp.eq.s32.totalorder %s136, 0
      %s139 = sadd.s32 %s138, 1
      %s140 = scalar_select %p137, %s138, %s139
      %p143 = pneg %p137
      %p144 = scmp.eq.s32.totalorder %s18, 1
      %p145 = por %p143, %p144
      %p146 = scmp.ne.s32.totalorder %s138, %s141
      %p147 = scmp.eq.s32.totalorder %s18, 0
      %p148 = por %p146, %p147
      %p149 = scmp.ne.s32.totalorder %s138, %s141
      %p150 = scmp.eq.s32.totalorder %s23, 1
      %p151 = por %p149, %p150
      %p152 = scmp.ne.s32.totalorder %s141, %s142
      %p153 = scmp.eq.s32.totalorder %s23, 0
      %p154 = por %p152, %p153
      %p155 = scmp.ne.s32.totalorder %s141, %s142
      %p156 = scmp.eq.s32.totalorder %s24, 1
      %p157 = por %p155, %p156
      %p159 = scmp.ne.s32.totalorder %s142, %s158
      %p160 = scmp.eq.s32.totalorder %s24, 0
      %p161 = por %p159, %p160
      %p162 = scmp.le.s32.totalorder 1, %s18
      %p163 = scmp.lt.s32.totalorder %s18, 3
      %p164 = pnand %p162, %p163
      %p165 = pneg %p164
      // Predicated region
      $region9: #{tpu_custom_call.1} parent=5 // pred_check
        _
      $region10: #{tpu_custom_call.1} parent=5 // pred_check_branch
        %167 = sbr.rel (%p164) target = $region12
      $region11: #{tpu_custom_call.1} parent=5 // pred_region
        %s168 = ssub.s32 %s18, 1
        // Predicated region
        $region13: #{tpu_custom_call.1} parent=11 // pred_check
          %p169 = pneg %p65
        $region14: #{tpu_custom_call.1} parent=11 // pred_check_branch
          %171 = sbr.rel (%p169) target = $region16
        $region15: #{tpu_custom_call.1} parent=11 // pred_region
          %s173 = ssub.s32 3072, 3072
          %174 = vsyncadd [#allocation8], %s173
          %s175 = sshll.u32 [#allocation7], 4
          %s176 = int_to_ptr.vmem [resolvable:$true] %s175
          %181 = dma.hbm_to_vmem [thread:$0]  %s1, 3072, %s176, [#allocation8], 64, 64, 4
        $region16: #{tpu_custom_call.1} parent=11 // pred_fallthru
          _
        // Predicated region
        $region17: #{tpu_custom_call.1} parent=11 // pred_check
          %p182 = pneg %p86
        $region18: #{tpu_custom_call.1} parent=11 // pred_check_branch
          %184 = sbr.rel (%p182) target = $region20
        $region19: #{tpu_custom_call.1} parent=11 // pred_region
          _
        $region20: #{tpu_custom_call.1} parent=11 // pred_fallthru
          _
        // Predicated region
        $region21: #{tpu_custom_call.1} parent=11 // pred_check
          %p185 = pneg %p107
        $region22: #{tpu_custom_call.1} parent=11 // pred_check_branch
          %187 = sbr.rel (%p185) target = $region24
        $region23: #{tpu_custom_call.1} parent=11 // pred_region
          %s189 = ssub.s32 3072, 3072
          %190 = vsyncadd [#allocation8], %s189
          %s191 = sshll.u32 [#allocation9], 4
          %s192 = int_to_ptr.vmem [resolvable:$true] %s191
          %197 = dma.hbm_to_vmem [thread:$0]  %s3, 3072, %s192, [#allocation8], 64, 64, 4
        $region24: #{tpu_custom_call.1} parent=11 // pred_fallthru
          _
        // Predicated region
        $region25: #{tpu_custom_call.1} parent=11 // pred_check
          %p198 = pneg %p128
        $region26: #{tpu_custom_call.1} parent=11 // pred_check_branch
          %200 = sbr.rel (%p198) target = $region28
        $region27: #{tpu_custom_call.1} parent=11 // pred_region
          _
        $region28: #{tpu_custom_call.1} parent=11 // pred_fallthru
          _
      $region12: #{tpu_custom_call.1} parent=5 // pred_fallthru
        _
      %p201 = scmp.lt.s32.totalorder %s18, 2
      // Predicated region
      $region29: #{tpu_custom_call.1} parent=5 // pred_check
        %p202 = pneg %p201
      $region30: #{tpu_custom_call.1} parent=5 // pred_check_branch
        %204 = sbr.rel (%p202) target = $region32
      $region31: #{tpu_custom_call.1} parent=5 // pred_region
        // Predicated region
        $region33: #{tpu_custom_call.1} parent=31 // pred_check
          %p205 = pneg %p38
        $region34: #{tpu_custom_call.1} parent=31 // pred_check_branch
          %207 = sbr.rel (%p205) target = $region36
        $region35: #{tpu_custom_call.1} parent=31 // pred_region
          %s208 = sand.u32 %s28, 1
          %s209 = scalar_lea.sflag [#allocation5], %s208
          %s210 = sand.u32 %s28, 1
          %s211 = smul.addr %s210, 32
          %s212 = scalar_lea.vmem [#allocation4], %s211
          %s213 = smul.u32 4, %s18
          %s215 = ssub.s32 512, 512
          %216 = vsyncadd %s209, %s215
          %s217 = smul.addr %s213, 2
          %s218 = smul.addr %s217, 64
          %s219 = scalar_lea.hbm %s0, %s218
          %s220 = sshll.u32 %s212, 4
          %s221 = int_to_ptr.vmem [resolvable:$true] %s220
          %226 = dma.hbm_to_vmem [thread:$0]  %s219, 512, %s221, %s209, 64, 64, 4
        $region36: #{tpu_custom_call.1} parent=31 // pred_fallthru
          _
      $region32: #{tpu_custom_call.1} parent=5 // pred_fallthru
        _
      %p227 = scmp.le.s32.totalorder 1, %s18
      %p228 = scmp.lt.s32.totalorder %s18, 3
      %p229 = pnand %p227, %p228
      %p230 = pneg %p229
      // Predicated region
      $region37: #{tpu_custom_call.1} parent=5 // pred_check
        _
      $region38: #{tpu_custom_call.1} parent=5 // pred_check_branch
        %232 = sbr.rel (%p229) target = $region40
      $region39: #{tpu_custom_call.1} parent=5 // pred_region
        %s233 = ssub.s32 %s18, 1
        %s234 = sand.u32 %s31, 1
        %s235 = scalar_lea.sflag [#allocation5], %s234
        %s236 = sand.u32 %s31, 1
        %s237 = smul.addr %s236, 32
        %s238 = scalar_lea.vmem [#allocation4], %s237
        // Predicated region
        $region41: #{tpu_custom_call.1} parent=39 // pred_check
          %p239 = pneg %p44
        $region42: #{tpu_custom_call.1} parent=39 // pred_check_branch
          %241 = sbr.rel (%p239) target = $region44
        $region43: #{tpu_custom_call.1} parent=39 // pred_region
          %242 = dma.done %s235, 512
        $region44: #{tpu_custom_call.1} parent=39 // pred_fallthru
          _
        // Predicated region
        $region45: #{tpu_custom_call.1} parent=39 // pred_check
          %p243 = pneg %p65
        $region46: #{tpu_custom_call.1} parent=39 // pred_check_branch
          %245 = sbr.rel (%p243) target = $region48
        $region47: #{tpu_custom_call.1} parent=39 // pred_region
          %246 = dma.done [#allocation8], 3072
        $region48: #{tpu_custom_call.1} parent=39 // pred_fallthru
          _
        // Predicated region
        $region49: #{tpu_custom_call.1} parent=39 // pred_check
          %p247 = pneg %p107
        $region50: #{tpu_custom_call.1} parent=39 // pred_check_branch
          %249 = sbr.rel (%p247) target = $region52
        $region51: #{tpu_custom_call.1} parent=39 // pred_region
          %250 = dma.done [#allocation8], 3072
        $region52: #{tpu_custom_call.1} parent=39 // pred_fallthru
          _
        %s251 = sand.u32 %s31, 1
        %s252 = scalar_lea.sflag [#allocation5], %s251
        %s253 = sand.u32 %s31, 1
        %s254 = smul.addr %s253, 32
        %s255 = scalar_lea.vmem [#allocation4], %s254
        %p256 = pneg %p44
        %p257 = pneg %p41
        %p258 = pneg %p65
        %p259 = pneg %p62
        %p260 = pneg %p86
        %p261 = pneg %p83
        %p262 = pneg %p107
        %p263 = pneg %p104
        %p264 = pneg %p128
        %p265 = pneg %p125
        %p266 = pneg %p154
        %p267 = pneg %p151
        %s268 = sand.u32 %s141, 1
        %s269 = scalar_lea.sflag [#allocation6], %s268
        %s270 = sand.u32 %s141, 1
        %s271 = smul.addr %s270, 32
        %s272 = scalar_lea.vmem [#allocation10], %s271
        %s273 = smul.u32 4, %s23
        %s274 = smul.u32 4, %s23
        %v276 = vld [vmem:[%s238] sm:$0xf]
        %v277 = vld [vmem:[%s238 + $0x4] sm:$0xf]
        %v278 = vld [vmem:[%s238 + $0x8] sm:$0xf]
        %v279 = vld [vmem:[%s238 + $0xc] sm:$0xf]
        %v280 = vld [vmem:[%s238 + $0x10] sm:$0xf]
        %v281 = vld [vmem:[%s238 + $0x14] sm:$0xf]
        %v282 = vld [vmem:[%s238 + $0x18] sm:$0xf]
        %v283 = vld [vmem:[%s238 + $0x1c] sm:$0xf]
        %vm284 = vcmask 1040384
        %vm285 = vsmask.f32 256
        %vm286 = vmand %vm284, %vm285
        %v287 = vld [vmem:[#allocation2] sm:$0x1]
        %v288 = vsel %vm286, 0, %v287
        %289 = vst [vmem:[#allocation2] sm:$0x1] %v288
        %v290 = vld [vmem:[#allocation2 + $0xc] sm:$0x1]
        %v291 = vsel %vm286, 0, %v290
        %292 = vst [vmem:[#allocation2 + $0xc] sm:$0x1] %v291
        %v293 = vld [vmem:[#allocation2 + $0x18] sm:$0x1]
        %v294 = vsel %vm286, 0, %v293
        %295 = vst [vmem:[#allocation2 + $0x18] sm:$0x1] %v294
        %v296 = vld [vmem:[#allocation2 + $0x24] sm:$0x1]
        %v297 = vsel %vm286, 0, %v296
        %298 = vst [vmem:[#allocation2 + $0x24] sm:$0x1] %v297
        %vm299 = vsmask.f32 7938
        %vm300 = vmand %vm284, %vm299
        %v301 = vld [vmem:[#allocation2 + $0x8] sm:$0x1]
        %v302 = vsel %vm300, 0, %v301
        %303 = vst [vmem:[#allocation2 + $0x8] sm:$0x1] %v302
        %v304 = vld [vmem:[#allocation2 + $0x14] sm:$0x1]
        %v305 = vsel %vm300, 0, %v304
        %306 = vst [vmem:[#allocation2 + $0x14] sm:$0x1] %v305
        %v307 = vld [vmem:[#allocation2 + $0x20] sm:$0x1]
        %v308 = vsel %vm300, 0, %v307
        %309 = vst [vmem:[#allocation2 + $0x20] sm:$0x1] %v308
        %v310 = vld [vmem:[#allocation2 + $0x2c] sm:$0x1]
        %v311 = vsel %vm300, 0, %v310
        %312 = vst [vmem:[#allocation2 + $0x2c] sm:$0x1] %v311
        %vm313 = vsmask.f32 4368
        %vm314 = vmor %vm285, %vm313
        %v316 = vshrl.u32 %v276, 16
        %v318 = vrot.slane %v316, 7
        %v319 = vshll.u32 %v276, 16
        %v321 = vor.u32 %v318, %v319
        %v322 = vrot.slane %v318, 4
        %v324 = vshrl.u32 %v277, 16
        %v326 = vrot.slane %v324, 7
        %v327 = vshll.u32 %v277, 16
        %v329 = vor.u32 %v326, %v327
        %v330 = vsel %vm314, %v322, %v329
        %v331 = vrot.slane %v326, 4
        %v333 = vshrl.u32 %v278, 16
        %v335 = vrot.slane %v333, 7
        %v336 = vshll.u32 %v278, 16
        %v338 = vor.u32 %v335, %v336
        %v339 = vrot.slane %v335, 4
        %v341 = vshrl.u32 %v279, 16
        %v343 = vrot.slane %v341, 7
        %v344 = vshll.u32 %v279, 16
        %v346 = vor.u32 %v343, %v344
        %v347 = vsel %vm314, %v339, %v346
        %v348 = vrot.slane %v343, 4
        %v350 = vshrl.u32 %v280, 16
        %v352 = vrot.slane %v350, 7
        %v353 = vshll.u32 %v280, 16
        %v355 = vor.u32 %v352, %v353
        %v356 = vrot.slane %v352, 4
        %v358 = vshrl.u32 %v281, 16
        %v360 = vrot.slane %v358, 7
        %v361 = vshll.u32 %v281, 16
        %v363 = vor.u32 %v360, %v361
        %v364 = vsel %vm314, %v356, %v363
        %v365 = vrot.slane %v360, 4
        %v367 = vshrl.u32 %v282, 16
        %v369 = vrot.slane %v367, 7
        %v370 = vshll.u32 %v282, 16
        %v372 = vor.u32 %v369, %v370
        %v373 = vrot.slane %v369, 4
        %v375 = vshrl.u32 %v283, 16
        %v377 = vrot.slane %v375, 7
        %v378 = vshll.u32 %v283, 16
        %v380 = vor.u32 %v377, %v378
        %v381 = vsel %vm314, %v373, %v380
        %v382 = vrot.slane %v377, 4
        %vm395 = vcmask 1043456
        %vm396 = vmand %vm395, %vm299
        %v397 = vld [vmem:[#allocation2] sm:$0xf]
        %v398 = vsel %vm396, %v321, %v397
        %399 = vst [vmem:[#allocation2] sm:$0xf] %v398
        %400 = vst [vmem:[#allocation2 + $0x4] sm:$0xf] %v330
        %v401 = vld [vmem:[#allocation2 + $0x8] sm:$0x1]
        %v402 = vsel %vm286, %v331, %v401
        %403 = vst [vmem:[#allocation2 + $0x8] sm:$0x1] %v402
        %v404 = vld [vmem:[#allocation2 + $0xc] sm:$0xf]
        %v405 = vsel %vm396, %v338, %v404
        %406 = vst [vmem:[#allocation2 + $0xc] sm:$0xf] %v405
        %407 = vst [vmem:[#allocation2 + $0x10] sm:$0xf] %v347
        %v408 = vld [vmem:[#allocation2 + $0x14] sm:$0x1]
        %v409 = vsel %vm286, %v348, %v408
        %410 = vst [vmem:[#allocation2 + $0x14] sm:$0x1] %v409
        %v411 = vld [vmem:[#allocation2 + $0x18] sm:$0xf]
        %v412 = vsel %vm396, %v355, %v411
        %413 = vst [vmem:[#allocation2 + $0x18] sm:$0xf] %v412
        %414 = vst [vmem:[#allocation2 + $0x1c] sm:$0xf] %v364
        %v415 = vld [vmem:[#allocation2 + $0x20] sm:$0x1]
        %v416 = vsel %vm286, %v365, %v415
        %417 = vst [vmem:[#allocation2 + $0x20] sm:$0x1] %v416
        %v418 = vld [vmem:[#allocation2 + $0x24] sm:$0xf]
        %v419 = vsel %vm396, %v372, %v418
        %420 = vst [vmem:[#allocation2 + $0x24] sm:$0xf] %v419
        %421 = vst [vmem:[#allocation2 + $0x28] sm:$0xf] %v381
        %v422 = vld [vmem:[#allocation2 + $0x2c] sm:$0x1]
        %v423 = vsel %vm286, %v382, %v422
        %424 = vst [vmem:[#allocation2 + $0x2c] sm:$0x1] %v423
        %v425 = vld [vmem:[#allocation2] sm:$0xf]
        %v426 = vld [vmem:[#allocation2 + $0x4] sm:$0xf]
        %v427 = vld [vmem:[#allocation2 + $0xc] sm:$0xf]
        %v428 = vld [vmem:[#allocation2 + $0x10] sm:$0xf]
        %v429 = vld [vmem:[#allocation2 + $0x18] sm:$0xf]
        %v430 = vld [vmem:[#allocation2 + $0x1c] sm:$0xf]
        %v431 = vld [vmem:[#allocation2 + $0x24] sm:$0xf]
        %v432 = vld [vmem:[#allocation2 + $0x28] sm:$0xf]
        %v433 = vld [vmem:[#allocation2] sm:$0xe]
        %v434 = vld [vmem:[#allocation2 + $0x8] sm:$0x1]
        %v435 = vld [vmem:[#allocation2 + $0xc] sm:$0xe]
        %v436 = vld [vmem:[#allocation2 + $0x14] sm:$0x1]
        %v437 = vld [vmem:[#allocation2 + $0x18] sm:$0xe]
        %v438 = vld [vmem:[#allocation2 + $0x20] sm:$0x1]
        %v439 = vld [vmem:[#allocation2 + $0x24] sm:$0xe]
        %v440 = vld [vmem:[#allocation2 + $0x2c] sm:$0x1]
        %v449 = vunpack.c.l.b16 %v425
        %v450 = vunpack.c.l.b16 %v426
        %v451 = vunpack.c.l.b16 %v427
        %v452 = vunpack.c.l.b16 %v428
        %v453 = vunpack.c.l.b16 %v429
        %v454 = vunpack.c.l.b16 %v430
        %v455 = vunpack.c.l.b16 %v431
        %v456 = vunpack.c.l.b16 %v432
        %v457 = vpack.c.b16 %v450, %v449
        %v458 = vpack.c.b16 %v452, %v451
        %v459 = vpack.c.b16 %v454, %v453
        %v460 = vpack.c.b16 %v456, %v455
        %v473 = vunpack.c.l.b16 %v276
        %v474 = vunpack.c.l.b16 %v277
        %v475 = vunpack.c.l.b16 %v278
        %v476 = vunpack.c.l.b16 %v279
        %v477 = vunpack.c.l.b16 %v280
        %v478 = vunpack.c.l.b16 %v281
        %v479 = vunpack.c.l.b16 %v282
        %v480 = vunpack.c.l.b16 %v283
        %v481 = vpack.c.b16 %v474, %v473
        %v482 = vpack.c.b16 %v476, %v475
        %v483 = vpack.c.b16 %v478, %v477
        %v484 = vpack.c.b16 %v480, %v479
        %v497 = vunpack.c.l.b16 %v433
        %v498 = vunpack.c.l.b16 %v434
        %v499 = vunpack.c.l.b16 %v435
        %v500 = vunpack.c.l.b16 %v436
        %v501 = vunpack.c.l.b16 %v437
        %v502 = vunpack.c.l.b16 %v438
        %v503 = vunpack.c.l.b16 %v439
        %v504 = vunpack.c.l.b16 %v440
        %v505 = vpack.c.b16 %v450, %v497
        %v506 = vpack.c.b16 %v498, %v498
        %v507 = vpack.c.b16 %v452, %v499
        %v508 = vpack.c.b16 %v500, %v500
        %v509 = vpack.c.b16 %v454, %v501
        %v510 = vpack.c.b16 %v502, %v502
        %v511 = vpack.c.b16 %v456, %v503
        %v512 = vpack.c.b16 %v504, %v504
        %vm513 = vcmask 1046528
        %v514 = vrot.slane %v505, 1
        %v515 = vrot.slane %v506, 1
        %v516 = vsel %vm513, %v514, %v515
        %v517 = vrot.slane %v507, 1
        %v518 = vrot.slane %v508, 1
        %v519 = vsel %vm513, %v517, %v518
        %v520 = vrot.slane %v509, 1
        %v521 = vrot.slane %v510, 1
        %v522 = vsel %vm513, %v520, %v521
        %v523 = vrot.slane %v511, 1
        %v524 = vrot.slane %v512, 1
        %v525 = vsel %vm513, %v523, %v524
        %v530 = vld [vmem:[#allocation7] sm:$0xf]
        %v531 = vld [vmem:[#allocation7 + $0x4] sm:$0xf]
        %v532 = vld [vmem:[#allocation7 + $0x8] sm:$0xf]
        %v533 = vld [vmem:[#allocation7 + $0xc] sm:$0xf]
        %v534 = vld [vmem:[#allocation7 + $0x10] sm:$0xf]
        %v535 = vld [vmem:[#allocation7 + $0x14] sm:$0xf]
        %v536 = vld [vmem:[#allocation7 + $0x18] sm:$0xf]
        %v537 = vld [vmem:[#allocation7 + $0x1c] sm:$0xf]
        %v538 = vld [vmem:[#allocation7 + $0x20] sm:$0xf]
        %v539 = vld [vmem:[#allocation7 + $0x24] sm:$0xf]
        %v540 = vld [vmem:[#allocation7 + $0x28] sm:$0xf]
        %v541 = vld [vmem:[#allocation7 + $0x2c] sm:$0xf]
        %v542 = vld [vmem:[#allocation7 + $0x30] sm:$0xf]
        %v543 = vld [vmem:[#allocation7 + $0x34] sm:$0xf]
        %v544 = vld [vmem:[#allocation7 + $0x38] sm:$0xf]
        %v545 = vld [vmem:[#allocation7 + $0x3c] sm:$0xf]
        %v546 = vld [vmem:[#allocation7 + $0x40] sm:$0xf]
        %v547 = vld [vmem:[#allocation7 + $0x44] sm:$0xf]
        %v548 = vld [vmem:[#allocation7 + $0x48] sm:$0xf]
        %v549 = vld [vmem:[#allocation7 + $0x4c] sm:$0xf]
        %v550 = vld [vmem:[#allocation7 + $0x50] sm:$0xf]
        %v551 = vld [vmem:[#allocation7 + $0x54] sm:$0xf]
        %v552 = vld [vmem:[#allocation7 + $0x58] sm:$0xf]
        %v553 = vld [vmem:[#allocation7 + $0x5c] sm:$0xf]
        %v554 = vld [vmem:[#allocation7 + $0x60] sm:$0xf]
        %v555 = vld [vmem:[#allocation7 + $0x64] sm:$0xf]
        %v556 = vld [vmem:[#allocation7 + $0x68] sm:$0xf]
        %v557 = vld [vmem:[#allocation7 + $0x6c] sm:$0xf]
        %v558 = vld [vmem:[#allocation7 + $0x70] sm:$0xf]
        %v559 = vld [vmem:[#allocation7 + $0x74] sm:$0xf]
        %v560 = vld [vmem:[#allocation7 + $0x78] sm:$0xf]
        %v561 = vld [vmem:[#allocation7 + $0x7c] sm:$0xf]
        %v562 = vld [vmem:[#allocation7 + $0x80] sm:$0xf]
        %v563 = vld [vmem:[#allocation7 + $0x84] sm:$0xf]
        %v564 = vld [vmem:[#allocation7 + $0x88] sm:$0xf]
        %v565 = vld [vmem:[#allocation7 + $0x8c] sm:$0xf]
        %v566 = vld [vmem:[#allocation7 + $0x90] sm:$0xf]
        %v567 = vld [vmem:[#allocation7 + $0x94] sm:$0xf]
        %v568 = vld [vmem:[#allocation7 + $0x98] sm:$0xf]
        %v569 = vld [vmem:[#allocation7 + $0x9c] sm:$0xf]
        %v570 = vld [vmem:[#allocation7 + $0xa0] sm:$0xf]
        %v571 = vld [vmem:[#allocation7 + $0xa4] sm:$0xf]
        %v572 = vld [vmem:[#allocation7 + $0xa8] sm:$0xf]
        %v573 = vld [vmem:[#allocation7 + $0xac] sm:$0xf]
        %v574 = vld [vmem:[#allocation7 + $0xb0] sm:$0xf]
        %v575 = vld [vmem:[#allocation7 + $0xb4] sm:$0xf]
        %v576 = vld [vmem:[#allocation7 + $0xb8] sm:$0xf]
        %v577 = vld [vmem:[#allocation7 + $0xbc] sm:$0xf]
        %v578 = vld [vmem:[%s2] sm:$0x1]
        %v580 = vlaneseq
        %v581 = vshrl.u32 %v580, 7
        %v582 = vsub.s32 0, %v581
        %v583 = vrot.slane %v578, %v582
        %v633 = vunpack.c.l.b16 %v530
        %v634 = vunpack.c.l.b16 %v531
        %v635 = vunpack.c.l.b16 %v532
        %v636 = vunpack.c.l.b16 %v533
        %v637 = vunpack.c.l.b16 %v534
        %v638 = vunpack.c.l.b16 %v535
        %v639 = vunpack.c.l.b16 %v536
        %v640 = vunpack.c.l.b16 %v537
        %v641 = vunpack.c.l.b16 %v538
        %v642 = vunpack.c.l.b16 %v539
        %v643 = vunpack.c.l.b16 %v540
        %v644 = vunpack.c.l.b16 %v541
        %v645 = vunpack.c.l.b16 %v542
        %v646 = vunpack.c.l.b16 %v543
        %v647 = vunpack.c.l.b16 %v544
        %v648 = vunpack.c.l.b16 %v545
        %v649 = vunpack.c.l.b16 %v546
        %v650 = vunpack.c.l.b16 %v547
        %v651 = vunpack.c.l.b16 %v548
        %v652 = vunpack.c.l.b16 %v549
        %v653 = vunpack.c.l.b16 %v550
        %v654 = vunpack.c.l.b16 %v551
        %v655 = vunpack.c.l.b16 %v552
        %v656 = vunpack.c.l.b16 %v553
        %v657 = vunpack.c.l.b16 %v554
        %v658 = vunpack.c.l.b16 %v555
        %v659 = vunpack.c.l.b16 %v556
        %v660 = vunpack.c.l.b16 %v557
        %v661 = vunpack.c.l.b16 %v558
        %v662 = vunpack.c.l.b16 %v559
        %v663 = vunpack.c.l.b16 %v560
        %v664 = vunpack.c.l.b16 %v561
        %v665 = vunpack.c.l.b16 %v562
        %v666 = vunpack.c.l.b16 %v563
        %v667 = vunpack.c.l.b16 %v564
        %v668 = vunpack.c.l.b16 %v565
        %v669 = vunpack.c.l.b16 %v566
        %v670 = vunpack.c.l.b16 %v567
        %v671 = vunpack.c.l.b16 %v568
        %v672 = vunpack.c.l.b16 %v569
        %v673 = vunpack.c.l.b16 %v570
        %v674 = vunpack.c.l.b16 %v571
        %v675 = vunpack.c.l.b16 %v572
        %v676 = vunpack.c.l.b16 %v573
        %v677 = vunpack.c.l.b16 %v574
        %v678 = vunpack.c.l.b16 %v575
        %v679 = vunpack.c.l.b16 %v576
        %v680 = vunpack.c.l.b16 %v577
        %v681 = vpack.c.b16 %v634, %v633
        %v682 = vpack.c.b16 %v636, %v635
        %v683 = vpack.c.b16 %v638, %v637
        %v684 = vpack.c.b16 %v640, %v639
        %v685 = vpack.c.b16 %v642, %v641
        %v686 = vpack.c.b16 %v644, %v643
        %v687 = vpack.c.b16 %v646, %v645
        %v688 = vpack.c.b16 %v648, %v647
        %v689 = vpack.c.b16 %v650, %v649
        %v690 = vpack.c.b16 %v652, %v651
        %v691 = vpack.c.b16 %v654, %v653
        %v692 = vpack.c.b16 %v656, %v655
        %v693 = vpack.c.b16 %v658, %v657
        %v694 = vpack.c.b16 %v660, %v659
        %v695 = vpack.c.b16 %v662, %v661
        %v696 = vpack.c.b16 %v664, %v663
        %v697 = vpack.c.b16 %v666, %v665
        %v698 = vpack.c.b16 %v668, %v667
        %v699 = vpack.c.b16 %v670, %v669
        %v700 = vpack.c.b16 %v672, %v671
        %v701 = vpack.c.b16 %v674, %v673
        %v702 = vpack.c.b16 %v676, %v675
        %v703 = vpack.c.b16 %v678, %v677
        %v704 = vpack.c.b16 %v680, %v679
        %729 = vmatprep.subr.bf16.mxu0 0
        %730 = vmatpush1.bf16.msra.mxu0 %v681
        %731 = vmatprep.subr.bf16.mxu0 0
        %732 = vmatpush1.bf16.msra.mxu0 %v682
        %733 = vmatprep.subr.bf16.mxu0 0
        %734 = vmatpush1.bf16.msra.mxu0 %v683
        %735 = vmatprep.subr.bf16.mxu0 0
        %736 = vmatpush1.bf16.msra.mxu0 %v684
        %737 = vmatprep.subr.bf16.mxu0 0
        %738 = vmatpush1.bf16.msra.mxu0 %v685
        %739 = vmatprep.subr.bf16.mxu0 0
        %740 = vmatpush1.bf16.msra.mxu0 %v686
        %741 = vmatprep.subr.bf16.mxu0 0
        %742 = vmatpush1.bf16.msra.mxu0 %v687
        %743 = vmatprep.subr.bf16.mxu0 0
        %744 = vmatpush1.bf16.msra.mxu0 %v688
        %745 = vmatprep.subr.bf16.mxu0 0
        %746 = vmatpush1.bf16.msra.mxu0 %v689
        %747 = vmatprep.subr.bf16.mxu0 0
        %748 = vmatpush1.bf16.msra.mxu0 %v690
        %749 = vmatprep.subr.bf16.mxu0 0
        %750 = vmatpush1.bf16.msra.mxu0 %v691
        %751 = vmatprep.subr.bf16.mxu0 0
        %752 = vmatpush1.bf16.msra.mxu0 %v692
        %753 = vmatprep.subr.bf16.mxu0 0
        %754 = vmatpush1.bf16.msra.mxu0 %v693
        %755 = vmatprep.subr.bf16.mxu0 0
        %756 = vmatpush1.bf16.msra.mxu0 %v694
        %757 = vmatprep.subr.bf16.mxu0 0
        %758 = vmatpush1.bf16.msra.mxu0 %v695
        %759 = vmatprep.subr.bf16.mxu0 0
        %760 = vmatpush1.bf16.msra.mxu0 %v696
        %761 = vmatprep.mubr.bf16.mxu0 %v481
        %762 = vmatmul.mubr.bf16.gmra.mrb[0].mxu0 %v457
        %v763 = vpop.f32.mrb[0].mxu0
        %v764 = vadd.f32 %v583, %v763
        %v765 = vpop.f32.mrb[0].mxu0
        %v766 = vpop.f32.mrb[0].mxu0
        %v767 = vadd.f32 %v583, %v766
        %v768 = vpop.f32.mrb[0].mxu0
        %769 = vmatprep.mubr.bf16.mxu0 %v482
        %770 = vmatmul.mubr.bf16.gmra.mrb[0].mxu0 %v458
        %v771 = vpop.f32.mrb[0].mxu0
        %v772 = vadd.f32 %v583, %v771
        %v773 = vpop.f32.mrb[0].mxu0
        %v774 = vpop.f32.mrb[0].mxu0
        %v775 = vadd.f32 %v583, %v774
        %v776 = vpop.f32.mrb[0].mxu0
        %777 = vmatprep.mubr.bf16.mxu0 %v483
        %778 = vmatmul.mubr.bf16.gmra.mrb[0].mxu0 %v459
        %v779 = vpop.f32.mrb[0].mxu0
        %v780 = vadd.f32 %v583, %v779
        %v781 = vpop.f32.mrb[0].mxu0
        %v782 = vpop.f32.mrb[0].mxu0
        %v783 = vadd.f32 %v583, %v782
        %v784 = vpop.f32.mrb[0].mxu0
        %785 = vmatprep.mubr.bf16.mxu0 %v484
        %786 = vmatmul.mubr.bf16.gmra.mrb[0].mxu0 %v460
        %v787 = vpop.f32.mrb[0].mxu0
        %v788 = vadd.f32 %v583, %v787
        %v789 = vpop.f32.mrb[0].mxu0
        %v790 = vpop.f32.mrb[0].mxu0
        %v791 = vadd.f32 %v583, %v790
        %v792 = vpop.f32.mrb[0].mxu0
        %793 = vdwg.mxu0
        %794 = vmatprep.subr.bf16.mxu0 0
        %795 = vmatpush1.bf16.msra.mxu0 %v697
        %796 = vmatprep.subr.bf16.mxu0 0
        %797 = vmatpush1.bf16.msra.mxu0 %v698
        %798 = vmatprep.subr.bf16.mxu0 0
        %799 = vmatpush1.bf16.msra.mxu0 %v699
        %800 = vmatprep.subr.bf16.mxu0 0
        %801 = vmatpush1.bf16.msra.mxu0 %v700
        %802 = vmatprep.subr.bf16.mxu0 0
        %803 = vmatpush1.bf16.msra.mxu0 %v701
        %804 = vmatprep.subr.bf16.mxu0 0
        %805 = vmatpush1.bf16.msra.mxu0 %v702
        %806 = vmatprep.subr.bf16.mxu0 0
        %807 = vmatpush1.bf16.msra.mxu0 %v703
        %808 = vmatprep.subr.bf16.mxu0 0
        %809 = vmatpush1.bf16.msra.mxu0 %v704
        %810 = vmatprep.subr.bf16.mxu0 0
        %811 = vmatpush1.bf16.msra.mxu0 0
        %812 = vmatprep.subr.bf16.mxu0 0
        %813 = vmatpush1.bf16.msra.mxu0 0
        %814 = vmatprep.subr.bf16.mxu0 0
        %815 = vmatpush1.bf16.msra.mxu0 0
        %816 = vmatprep.subr.bf16.mxu0 0
        %817 = vmatpush1.bf16.msra.mxu0 0
        %818 = vmatprep.subr.bf16.mxu0 0
        %819 = vmatpush1.bf16.msra.mxu0 0
        %820 = vmatprep.subr.bf16.mxu0 0
        %821 = vmatpush1.bf16.msra.mxu0 0
        %822 = vmatprep.subr.bf16.mxu0 0
        %823 = vmatpush1.bf16.msra.mxu0 0
        %824 = vmatprep.subr.bf16.mxu0 0
        %825 = vmatpush1.bf16.msra.mxu0 0
        %826 = vmatprep.mubr.bf16.mxu0 0
        %827 = vmatmul.mubr.bf16.gmra.mrb[0].mxu0 %v516
        %v828 = vpop.f32.mrb[0].mxu0
        %v829 = vadd.f32 %v764, %v828
        %v830 = vpop.f32.mrb[0].mxu0
        %v831 = vpop.f32.mrb[0].mxu0
        %v832 = vadd.f32 %v767, %v831
        %v833 = vpop.f32.mrb[0].mxu0
        %834 = vmatprep.mubr.bf16.mxu0 0
        %835 = vmatmul.mubr.bf16.gmra.mrb[0].mxu0 %v519
        %v836 = vpop.f32.mrb[0].mxu0
        %v837 = vadd.f32 %v772, %v836
        %v838 = vpop.f32.mrb[0].mxu0
        %v839 = vpop.f32.mrb[0].mxu0
        %v840 = vadd.f32 %v775, %v839
        %v841 = vpop.f32.mrb[0].mxu0
        %842 = vmatprep.mubr.bf16.mxu0 0
        %843 = vmatmul.mubr.bf16.gmra.mrb[0].mxu0 %v522
        %v844 = vpop.f32.mrb[0].mxu0
        %v845 = vadd.f32 %v780, %v844
        %v846 = vpop.f32.mrb[0].mxu0
        %v847 = vpop.f32.mrb[0].mxu0
        %v848 = vadd.f32 %v783, %v847
        %v849 = vpop.f32.mrb[0].mxu0
        %850 = vmatprep.mubr.bf16.mxu0 0
        %851 = vmatmul.mubr.bf16.gmra.mrb[0].mxu0 %v525
        %v852 = vpop.f32.mrb[0].mxu0
        %v853 = vadd.f32 %v788, %v852
        %v854 = vpop.f32.mrb[0].mxu0
        %v855 = vpop.f32.mrb[0].mxu0
        %v856 = vadd.f32 %v791, %v855
        %v857 = vpop.f32.mrb[0].mxu0
        %858 = vdwg.mxu0
        %v859 = vmax.f32 %v829, 0.0
        %v860 = vmax.f32 %v832, 0.0
        %v861 = vmax.f32 %v837, 0.0
        %v862 = vmax.f32 %v840, 0.0
        %v863 = vmax.f32 %v845, 0.0
        %v864 = vmax.f32 %v848, 0.0
        %v865 = vmax.f32 %v853, 0.0
        %v866 = vmax.f32 %v856, 0.0
        %v867 = vpack.c.bf16 %v860, %v859
        %v868 = vpack.c.bf16 %v862, %v861
        %v869 = vpack.c.bf16 %v864, %v863
        %v870 = vpack.c.bf16 %v866, %v865
        %v871 = vld [vmem:[#allocation3] sm:$0x1]
        %v872 = vsel %vm286, 0, %v871
        %873 = vst [vmem:[#allocation3] sm:$0x1] %v872
        %v874 = vld [vmem:[#allocation3 + $0xc] sm:$0x1]
        %v875 = vsel %vm286, 0, %v874
        %876 = vst [vmem:[#allocation3 + $0xc] sm:$0x1] %v875
        %v877 = vld [vmem:[#allocation3 + $0x18] sm:$0x1]
        %v878 = vsel %vm286, 0, %v877
        %879 = vst [vmem:[#allocation3 + $0x18] sm:$0x1] %v878
        %v880 = vld [vmem:[#allocation3 + $0x24] sm:$0x1]
        %v881 = vsel %vm286, 0, %v880
        %882 = vst [vmem:[#allocation3 + $0x24] sm:$0x1] %v881
        %v883 = vld [vmem:[#allocation3 + $0x8] sm:$0x1]
        %v884 = vsel %vm300, 0, %v883
        %885 = vst [vmem:[#allocation3 + $0x8] sm:$0x1] %v884
        %v886 = vld [vmem:[#allocation3 + $0x14] sm:$0x1]
        %v887 = vsel %vm300, 0, %v886
        %888 = vst [vmem:[#allocation3 + $0x14] sm:$0x1] %v887
        %v889 = vld [vmem:[#allocation3 + $0x20] sm:$0x1]
        %v890 = vsel %vm300, 0, %v889
        %891 = vst [vmem:[#allocation3 + $0x20] sm:$0x1] %v890
        %v892 = vld [vmem:[#allocation3 + $0x2c] sm:$0x1]
        %v893 = vsel %vm300, 0, %v892
        %894 = vst [vmem:[#allocation3 + $0x2c] sm:$0x1] %v893
        %v899 = vunpack.c.l.b16 %v867
        %v900 = vunpack.c.h.b16 %v867
        %v901 = vunpack.c.l.b16 %v868
        %v902 = vunpack.c.h.b16 %v868
        %v903 = vunpack.c.l.b16 %v869
        %v904 = vunpack.c.h.b16 %v869
        %v905 = vunpack.c.l.b16 %v870
        %v906 = vunpack.c.h.b16 %v870
        %v907 = vpack.c.b16 %v899, %v899
        %v908 = vpack.c.b16 %v900, %v900
        %v909 = vpack.c.b16 %v901, %v901
        %v910 = vpack.c.b16 %v902, %v902
        %v911 = vpack.c.b16 %v903, %v903
        %v912 = vpack.c.b16 %v904, %v904
        %v913 = vpack.c.b16 %v905, %v905
        %v914 = vpack.c.b16 %v906, %v906
        %v916 = vshrl.u32 %v907, 16
        %v918 = vrot.slane %v916, 7
        %v919 = vshll.u32 %v907, 16
        %v921 = vor.u32 %v918, %v919
        %v922 = vrot.slane %v918, 4
        %v924 = vshrl.u32 %v908, 16
        %v926 = vrot.slane %v924, 7
        %v927 = vshll.u32 %v908, 16
        %v929 = vor.u32 %v926, %v927
        %v930 = vsel %vm314, %v922, %v929
        %v931 = vrot.slane %v926, 4
        %v933 = vshrl.u32 %v909, 16
        %v935 = vrot.slane %v933, 7
        %v936 = vshll.u32 %v909, 16
        %v938 = vor.u32 %v935, %v936
        %v939 = vrot.slane %v935, 4
        %v941 = vshrl.u32 %v910, 16
        %v943 = vrot.slane %v941, 7
        %v944 = vshll.u32 %v910, 16
        %v946 = vor.u32 %v943, %v944
        %v947 = vsel %vm314, %v939, %v946
        %v948 = vrot.slane %v943, 4
        %v950 = vshrl.u32 %v911, 16
        %v952 = vrot.slane %v950, 7
        %v953 = vshll.u32 %v911, 16
        %v955 = vor.u32 %v952, %v953
        %v956 = vrot.slane %v952, 4
        %v958 = vshrl.u32 %v912, 16
        %v960 = vrot.slane %v958, 7
        %v961 = vshll.u32 %v912, 16
        %v963 = vor.u32 %v960, %v961
        %v964 = vsel %vm314, %v956, %v963
        %v965 = vrot.slane %v960, 4
        %v967 = vshrl.u32 %v913, 16
        %v969 = vrot.slane %v967, 7
        %v970 = vshll.u32 %v913, 16
        %v972 = vor.u32 %v969, %v970
        %v973 = vrot.slane %v969, 4
        %v975 = vshrl.u32 %v914, 16
        %v977 = vrot.slane %v975, 7
        %v978 = vshll.u32 %v914, 16
        %v980 = vor.u32 %v977, %v978
        %v981 = vsel %vm314, %v973, %v980
        %v982 = vrot.slane %v977, 4
        %v995 = vld [vmem:[#allocation3] sm:$0xf]
        %v996 = vsel %vm396, %v921, %v995
        %997 = vst [vmem:[#allocation3] sm:$0xf] %v996
        %998 = vst [vmem:[#allocation3 + $0x4] sm:$0xf] %v930
        %v999 = vld [vmem:[#allocation3 + $0x8] sm:$0x1]
        %v1000 = vsel %vm286, %v931, %v999
        %1001 = vst [vmem:[#allocation3 + $0x8] sm:$0x1] %v1000
        %v1002 = vld [vmem:[#allocation3 + $0xc] sm:$0xf]
        %v1003 = vsel %vm396, %v938, %v1002
        %1004 = vst [vmem:[#allocation3 + $0xc] sm:$0xf] %v1003
        %1005 = vst [vmem:[#allocation3 + $0x10] sm:$0xf] %v947
        %v1006 = vld [vmem:[#allocation3 + $0x14] sm:$0x1]
        %v1007 = vsel %vm286, %v948, %v1006
        %1008 = vst [vmem:[#allocation3 + $0x14] sm:$0x1] %v1007
        %v1009 = vld [vmem:[#allocation3 + $0x18] sm:$0xf]
        %v1010 = vsel %vm396, %v955, %v1009
        %1011 = vst [vmem:[#allocation3 + $0x18] sm:$0xf] %v1010
        %1012 = vst [vmem:[#allocation3 + $0x1c] sm:$0xf] %v964
        %v1013 = vld [vmem:[#allocation3 + $0x20] sm:$0x1]
        %v1014 = vsel %vm286, %v965, %v1013
        %1015 = vst [vmem:[#allocation3 + $0x20] sm:$0x1] %v1014
        %v1016 = vld [vmem:[#allocation3 + $0x24] sm:$0xf]
        %v1017 = vsel %vm396, %v972, %v1016
        %1018 = vst [vmem:[#allocation3 + $0x24] sm:$0xf] %v1017
        %1019 = vst [vmem:[#allocation3 + $0x28] sm:$0xf] %v981
        %v1020 = vld [vmem:[#allocation3 + $0x2c] sm:$0x1]
        %v1021 = vsel %vm286, %v982, %v1020
        %1022 = vst [vmem:[#allocation3 + $0x2c] sm:$0x1] %v1021
        %v1023 = vld [vmem:[#allocation3] sm:$0xf]
        %v1024 = vld [vmem:[#allocation3 + $0x4] sm:$0xf]
        %v1025 = vld [vmem:[#allocation3 + $0xc] sm:$0xf]
        %v1026 = vld [vmem:[#allocation3 + $0x10] sm:$0xf]
        %v1027 = vld [vmem:[#allocation3 + $0x18] sm:$0xf]
        %v1028 = vld [vmem:[#allocation3 + $0x1c] sm:$0xf]
        %v1029 = vld [vmem:[#allocation3 + $0x24] sm:$0xf]
        %v1030 = vld [vmem:[#allocation3 + $0x28] sm:$0xf]
        %v1031 = vld [vmem:[#allocation3] sm:$0xe]
        %v1032 = vld [vmem:[#allocation3 + $0x8] sm:$0x1]
        %v1033 = vld [vmem:[#allocation3 + $0xc] sm:$0xe]
        %v1034 = vld [vmem:[#allocation3 + $0x14] sm:$0x1]
        %v1035 = vld [vmem:[#allocation3 + $0x18] sm:$0xe]
        %v1036 = vld [vmem:[#allocation3 + $0x20] sm:$0x1]
        %v1037 = vld [vmem:[#allocation3 + $0x24] sm:$0xe]
        %v1038 = vld [vmem:[#allocation3 + $0x2c] sm:$0x1]
        %v1047 = vunpack.c.l.b16 %v1023
        %v1048 = vunpack.c.l.b16 %v1024
        %v1049 = vunpack.c.l.b16 %v1025
        %v1050 = vunpack.c.l.b16 %v1026
        %v1051 = vunpack.c.l.b16 %v1027
        %v1052 = vunpack.c.l.b16 %v1028
        %v1053 = vunpack.c.l.b16 %v1029
        %v1054 = vunpack.c.l.b16 %v1030
        %v1055 = vpack.c.b16 %v1048, %v1047
        %v1056 = vpack.c.b16 %v1050, %v1049
        %v1057 = vpack.c.b16 %v1052, %v1051
        %v1058 = vpack.c.b16 %v1054, %v1053
        %v1071 = vunpack.c.l.b16 %v1031
        %v1072 = vunpack.c.l.b16 %v1032
        %v1073 = vunpack.c.l.b16 %v1033
        %v1074 = vunpack.c.l.b16 %v1034
        %v1075 = vunpack.c.l.b16 %v1035
        %v1076 = vunpack.c.l.b16 %v1036
        %v1077 = vunpack.c.l.b16 %v1037
        %v1078 = vunpack.c.l.b16 %v1038
        %v1079 = vpack.c.b16 %v1048, %v1071
        %v1080 = vpack.c.b16 %v1072, %v1072
        %v1081 = vpack.c.b16 %v1050, %v1073
        %v1082 = vpack.c.b16 %v1074, %v1074
        %v1083 = vpack.c.b16 %v1052, %v1075
        %v1084 = vpack.c.b16 %v1076, %v1076
        %v1085 = vpack.c.b16 %v1054, %v1077
        %v1086 = vpack.c.b16 %v1078, %v1078
        %v1087 = vrot.slane %v1079, 1
        %v1088 = vrot.slane %v1080, 1
        %v1089 = vsel %vm513, %v1087, %v1088
        %v1090 = vrot.slane %v1081, 1
        %v1091 = vrot.slane %v1082, 1
        %v1092 = vsel %vm513, %v1090, %v1091
        %v1093 = vrot.slane %v1083, 1
        %v1094 = vrot.slane %v1084, 1
        %v1095 = vsel %vm513, %v1093, %v1094
        %v1096 = vrot.slane %v1085, 1
        %v1097 = vrot.slane %v1086, 1
        %v1098 = vsel %vm513, %v1096, %v1097
        %v1103 = vld [vmem:[#allocation9] sm:$0xf]
        %v1104 = vld [vmem:[#allocation9 + $0x4] sm:$0xf]
        %v1105 = vld [vmem:[#allocation9 + $0x8] sm:$0xf]
        %v1106 = vld [vmem:[#allocation9 + $0xc] sm:$0xf]
        %v1107 = vld [vmem:[#allocation9 + $0x10] sm:$0xf]
        %v1108 = vld [vmem:[#allocation9 + $0x14] sm:$0xf]
        %v1109 = vld [vmem:[#allocation9 + $0x18] sm:$0xf]
        %v1110 = vld [vmem:[#allocation9 + $0x1c] sm:$0xf]
        %v1111 = vld [vmem:[#allocation9 + $0x20] sm:$0xf]
        %v1112 = vld [vmem:[#allocation9 + $0x24] sm:$0xf]
        %v1113 = vld [vmem:[#allocation9 + $0x28] sm:$0xf]
        %v1114 = vld [vmem:[#allocation9 + $0x2c] sm:$0xf]
        %v1115 = vld [vmem:[#allocation9 + $0x30] sm:$0xf]
        %v1116 = vld [vmem:[#allocation9 + $0x34] sm:$0xf]
        %v1117 = vld [vmem:[#allocation9 + $0x38] sm:$0xf]
        %v1118 = vld [vmem:[#allocation9 + $0x3c] sm:$0xf]
        %v1119 = vld [vmem:[#allocation9 + $0x40] sm:$0xf]
        %v1120 = vld [vmem:[#allocation9 + $0x44] sm:$0xf]
        %v1121 = vld [vmem:[#allocation9 + $0x48] sm:$0xf]
        %v1122 = vld [vmem:[#allocation9 + $0x4c] sm:$0xf]
        %v1123 = vld [vmem:[#allocation9 + $0x50] sm:$0xf]
        %v1124 = vld [vmem:[#allocation9 + $0x54] sm:$0xf]
        %v1125 = vld [vmem:[#allocation9 + $0x58] sm:$0xf]
        %v1126 = vld [vmem:[#allocation9 + $0x5c] sm:$0xf]
        %v1127 = vld [vmem:[#allocation9 + $0x60] sm:$0xf]
        %v1128 = vld [vmem:[#allocation9 + $0x64] sm:$0xf]
        %v1129 = vld [vmem:[#allocation9 + $0x68] sm:$0xf]
        %v1130 = vld [vmem:[#allocation9 + $0x6c] sm:$0xf]
        %v1131 = vld [vmem:[#allocation9 + $0x70] sm:$0xf]
        %v1132 = vld [vmem:[#allocation9 + $0x74] sm:$0xf]
        %v1133 = vld [vmem:[#allocation9 + $0x78] sm:$0xf]
        %v1134 = vld [vmem:[#allocation9 + $0x7c] sm:$0xf]
        %v1135 = vld [vmem:[#allocation9 + $0x80] sm:$0xf]
        %v1136 = vld [vmem:[#allocation9 + $0x84] sm:$0xf]
        %v1137 = vld [vmem:[#allocation9 + $0x88] sm:$0xf]
        %v1138 = vld [vmem:[#allocation9 + $0x8c] sm:$0xf]
        %v1139 = vld [vmem:[#allocation9 + $0x90] sm:$0xf]
        %v1140 = vld [vmem:[#allocation9 + $0x94] sm:$0xf]
        %v1141 = vld [vmem:[#allocation9 + $0x98] sm:$0xf]
        %v1142 = vld [vmem:[#allocation9 + $0x9c] sm:$0xf]
        %v1143 = vld [vmem:[#allocation9 + $0xa0] sm:$0xf]
        %v1144 = vld [vmem:[#allocation9 + $0xa4] sm:$0xf]
        %v1145 = vld [vmem:[#allocation9 + $0xa8] sm:$0xf]
        %v1146 = vld [vmem:[#allocation9 + $0xac] sm:$0xf]
        %v1147 = vld [vmem:[#allocation9 + $0xb0] sm:$0xf]
        %v1148 = vld [vmem:[#allocation9 + $0xb4] sm:$0xf]
        %v1149 = vld [vmem:[#allocation9 + $0xb8] sm:$0xf]
        %v1150 = vld [vmem:[#allocation9 + $0xbc] sm:$0xf]
        %v1151 = vunpack.c.l.bf16 %v276
        %v1152 = vunpack.c.l.bf16 %v277
        %v1153 = vunpack.c.l.bf16 %v278
        %v1154 = vunpack.c.l.bf16 %v279
        %v1155 = vunpack.c.l.bf16 %v280
        %v1156 = vunpack.c.l.bf16 %v281
        %v1157 = vunpack.c.l.bf16 %v282
        %v1158 = vunpack.c.l.bf16 %v283
        %v1159 = vld [vmem:[%s4] sm:$0x1]
        %v1161 = vlaneseq
        %v1162 = vshrl.u32 %v1161, 7
        %v1163 = vsub.s32 0, %v1162
        %v1164 = vrot.slane %v1159, %v1163
        %v1214 = vunpack.c.l.b16 %v1103
        %v1215 = vunpack.c.l.b16 %v1104
        %v1216 = vunpack.c.l.b16 %v1105
        %v1217 = vunpack.c.l.b16 %v1106
        %v1218 = vunpack.c.l.b16 %v1107
        %v1219 = vunpack.c.l.b16 %v1108
        %v1220 = vunpack.c.l.b16 %v1109
        %v1221 = vunpack.c.l.b16 %v1110
        %v1222 = vunpack.c.l.b16 %v1111
        %v1223 = vunpack.c.l.b16 %v1112
        %v1224 = vunpack.c.l.b16 %v1113
        %v1225 = vunpack.c.l.b16 %v1114
        %v1226 = vunpack.c.l.b16 %v1115
        %v1227 = vunpack.c.l.b16 %v1116
        %v1228 = vunpack.c.l.b16 %v1117
        %v1229 = vunpack.c.l.b16 %v1118
        %v1230 = vunpack.c.l.b16 %v1119
        %v1231 = vunpack.c.l.b16 %v1120
        %v1232 = vunpack.c.l.b16 %v1121
        %v1233 = vunpack.c.l.b16 %v1122
        %v1234 = vunpack.c.l.b16 %v1123
        %v1235 = vunpack.c.l.b16 %v1124
        %v1236 = vunpack.c.l.b16 %v1125
        %v1237 = vunpack.c.l.b16 %v1126
        %v1238 = vunpack.c.l.b16 %v1127
        %v1239 = vunpack.c.l.b16 %v1128
        %v1240 = vunpack.c.l.b16 %v1129
        %v1241 = vunpack.c.l.b16 %v1130
        %v1242 = vunpack.c.l.b16 %v1131
        %v1243 = vunpack.c.l.b16 %v1132
        %v1244 = vunpack.c.l.b16 %v1133
        %v1245 = vunpack.c.l.b16 %v1134
        %v1246 = vunpack.c.l.b16 %v1135
        %v1247 = vunpack.c.l.b16 %v1136
        %v1248 = vunpack.c.l.b16 %v1137
        %v1249 = vunpack.c.l.b16 %v1138
        %v1250 = vunpack.c.l.b16 %v1139
        %v1251 = vunpack.c.l.b16 %v1140
        %v1252 = vunpack.c.l.b16 %v1141
        %v1253 = vunpack.c.l.b16 %v1142
        %v1254 = vunpack.c.l.b16 %v1143
        %v1255 = vunpack.c.l.b16 %v1144
        %v1256 = vunpack.c.l.b16 %v1145
        %v1257 = vunpack.c.l.b16 %v1146
        %v1258 = vunpack.c.l.b16 %v1147
        %v1259 = vunpack.c.l.b16 %v1148
        %v1260 = vunpack.c.l.b16 %v1149
        %v1261 = vunpack.c.l.b16 %v1150
        %v1262 = vpack.c.b16 %v1215, %v1214
        %v1263 = vpack.c.b16 %v1217, %v1216
        %v1264 = vpack.c.b16 %v1219, %v1218
        %v1265 = vpack.c.b16 %v1221, %v1220
        %v1266 = vpack.c.b16 %v1223, %v1222
        %v1267 = vpack.c.b16 %v1225, %v1224
        %v1268 = vpack.c.b16 %v1227, %v1226
        %v1269 = vpack.c.b16 %v1229, %v1228
        %v1270 = vpack.c.b16 %v1231, %v1230
        %v1271 = vpack.c.b16 %v1233, %v1232
        %v1272 = vpack.c.b16 %v1235, %v1234
        %v1273 = vpack.c.b16 %v1237, %v1236
        %v1274 = vpack.c.b16 %v1239, %v1238
        %v1275 = vpack.c.b16 %v1241, %v1240
        %v1276 = vpack.c.b16 %v1243, %v1242
        %v1277 = vpack.c.b16 %v1245, %v1244
        %v1278 = vpack.c.b16 %v1247, %v1246
        %v1279 = vpack.c.b16 %v1249, %v1248
        %v1280 = vpack.c.b16 %v1251, %v1250
        %v1281 = vpack.c.b16 %v1253, %v1252
        %v1282 = vpack.c.b16 %v1255, %v1254
        %v1283 = vpack.c.b16 %v1257, %v1256
        %v1284 = vpack.c.b16 %v1259, %v1258
        %v1285 = vpack.c.b16 %v1261, %v1260
        %1310 = vmatprep.subr.bf16.mxu0 0
        %1311 = vmatpush1.bf16.msra.mxu0 %v1262
        %1312 = vmatprep.subr.bf16.mxu0 0
        %1313 = vmatpush1.bf16.msra.mxu0 %v1263
        %1314 = vmatprep.subr.bf16.mxu0 0
        %1315 = vmatpush1.bf16.msra.mxu0 %v1264
        %1316 = vmatprep.subr.bf16.mxu0 0
        %1317 = vmatpush1.bf16.msra.mxu0 %v1265
        %1318 = vmatprep.subr.bf16.mxu0 0
        %1319 = vmatpush1.bf16.msra.mxu0 %v1266
        %1320 = vmatprep.subr.bf16.mxu0 0
        %1321 = vmatpush1.bf16.msra.mxu0 %v1267
        %1322 = vmatprep.subr.bf16.mxu0 0
        %1323 = vmatpush1.bf16.msra.mxu0 %v1268
        %1324 = vmatprep.subr.bf16.mxu0 0
        %1325 = vmatpush1.bf16.msra.mxu0 %v1269
        %1326 = vmatprep.subr.bf16.mxu0 0
        %1327 = vmatpush1.bf16.msra.mxu0 %v1270
        %1328 = vmatprep.subr.bf16.mxu0 0
        %1329 = vmatpush1.bf16.msra.mxu0 %v1271
        %1330 = vmatprep.subr.bf16.mxu0 0
        %1331 = vmatpush1.bf16.msra.mxu0 %v1272
        %1332 = vmatprep.subr.bf16.mxu0 0
        %1333 = vmatpush1.bf16.msra.mxu0 %v1273
        %1334 = vmatprep.subr.bf16.mxu0 0
        %1335 = vmatpush1.bf16.msra.mxu0 %v1274
        %1336 = vmatprep.subr.bf16.mxu0 0
        %1337 = vmatpush1.bf16.msra.mxu0 %v1275
        %1338 = vmatprep.subr.bf16.mxu0 0
        %1339 = vmatpush1.bf16.msra.mxu0 %v1276
        %1340 = vmatprep.subr.bf16.mxu0 0
        %1341 = vmatpush1.bf16.msra.mxu0 %v1277
        %1342 = vmatprep.mubr.bf16.mxu0 %v867
        %1343 = vmatmul.mubr.bf16.gmra.mrb[0].mxu0 %v1055
        %v1344 = vpop.f32.mrb[0].mxu0
        %v1345 = vadd.f32 %v1164, %v1344
        %v1346 = vpop.f32.mrb[0].mxu0
        %v1347 = vpop.f32.mrb[0].mxu0
        %v1348 = vadd.f32 %v1164, %v1347
        %v1349 = vpop.f32.mrb[0].mxu0
        %1350 = vmatprep.mubr.bf16.mxu0 %v868
        %1351 = vmatmul.mubr.bf16.gmra.mrb[0].mxu0 %v1056
        %v1352 = vpop.f32.mrb[0].mxu0
        %v1353 = vadd.f32 %v1164, %v1352
        %v1354 = vpop.f32.mrb[0].mxu0
        %v1355 = vpop.f32.mrb[0].mxu0
        %v1356 = vadd.f32 %v1164, %v1355
        %v1357 = vpop.f32.mrb[0].mxu0
        %1358 = vmatprep.mubr.bf16.mxu0 %v869
        %1359 = vmatmul.mubr.bf16.gmra.mrb[0].mxu0 %v1057
        %v1360 = vpop.f32.mrb[0].mxu0
        %v1361 = vadd.f32 %v1164, %v1360
        %v1362 = vpop.f32.mrb[0].mxu0
        %v1363 = vpop.f32.mrb[0].mxu0
        %v1364 = vadd.f32 %v1164, %v1363
        %v1365 = vpop.f32.mrb[0].mxu0
        %1366 = vmatprep.mubr.bf16.mxu0 %v870
        %1367 = vmatmul.mubr.bf16.gmra.mrb[0].mxu0 %v1058
        %v1368 = vpop.f32.mrb[0].mxu0
        %v1369 = vadd.f32 %v1164, %v1368
        %v1370 = vpop.f32.mrb[0].mxu0
        %v1371 = vpop.f32.mrb[0].mxu0
        %v1372 = vadd.f32 %v1164, %v1371
        %v1373 = vpop.f32.mrb[0].mxu0
        %1374 = vdwg.mxu0
        %1375 = vmatprep.subr.bf16.mxu0 0
        %1376 = vmatpush1.bf16.msra.mxu0 %v1278
        %1377 = vmatprep.subr.bf16.mxu0 0
        %1378 = vmatpush1.bf16.msra.mxu0 %v1279
        %1379 = vmatprep.subr.bf16.mxu0 0
        %1380 = vmatpush1.bf16.msra.mxu0 %v1280
        %1381 = vmatprep.subr.bf16.mxu0 0
        %1382 = vmatpush1.bf16.msra.mxu0 %v1281
        %1383 = vmatprep.subr.bf16.mxu0 0
        %1384 = vmatpush1.bf16.msra.mxu0 %v1282
        %1385 = vmatprep.subr.bf16.mxu0 0
        %1386 = vmatpush1.bf16.msra.mxu0 %v1283
        %1387 = vmatprep.subr.bf16.mxu0 0
        %1388 = vmatpush1.bf16.msra.mxu0 %v1284
        %1389 = vmatprep.subr.bf16.mxu0 0
        %1390 = vmatpush1.bf16.msra.mxu0 %v1285
        %1391 = vmatprep.subr.bf16.mxu0 0
        %1392 = vmatpush1.bf16.msra.mxu0 0
        %1393 = vmatprep.subr.bf16.mxu0 0
        %1394 = vmatpush1.bf16.msra.mxu0 0
        %1395 = vmatprep.subr.bf16.mxu0 0
        %1396 = vmatpush1.bf16.msra.mxu0 0
        %1397 = vmatprep.subr.bf16.mxu0 0
        %1398 = vmatpush1.bf16.msra.mxu0 0
        %1399 = vmatprep.subr.bf16.mxu0 0
        %1400 = vmatpush1.bf16.msra.mxu0 0
        %1401 = vmatprep.subr.bf16.mxu0 0
        %1402 = vmatpush1.bf16.msra.mxu0 0
        %1403 = vmatprep.subr.bf16.mxu0 0
        %1404 = vmatpush1.bf16.msra.mxu0 0
        %1405 = vmatprep.subr.bf16.mxu0 0
        %1406 = vmatpush1.bf16.msra.mxu0 0
        %1407 = vmatprep.mubr.bf16.mxu0 0
        %1408 = vmatmul.mubr.bf16.gmra.mrb[0].mxu0 %v1089
        %v1409 = vpop.f32.mrb[0].mxu0
        %v1410 = vadd.f32 %v1345, %v1409
        %v1411 = vpop.f32.mrb[0].mxu0
        %v1412 = vpop.f32.mrb[0].mxu0
        %v1413 = vadd.f32 %v1348, %v1412
        %v1414 = vpop.f32.mrb[0].mxu0
        %1415 = vmatprep.mubr.bf16.mxu0 0
        %1416 = vmatmul.mubr.bf16.gmra.mrb[0].mxu0 %v1092
        %v1417 = vpop.f32.mrb[0].mxu0
        %v1418 = vadd.f32 %v1353, %v1417
        %v1419 = vpop.f32.mrb[0].mxu0
        %v1420 = vpop.f32.mrb[0].mxu0
        %v1421 = vadd.f32 %v1356, %v1420
        %v1422 = vpop.f32.mrb[0].mxu0
        %1423 = vmatprep.mubr.bf16.mxu0 0
        %1424 = vmatmul.mubr.bf16.gmra.mrb[0].mxu0 %v1095
        %v1425 = vpop.f32.mrb[0].mxu0
        %v1426 = vadd.f32 %v1361, %v1425
        %v1427 = vpop.f32.mrb[0].mxu0
        %v1428 = vpop.f32.mrb[0].mxu0
        %v1429 = vadd.f32 %v1364, %v1428
        %v1430 = vpop.f32.mrb[0].mxu0
        %1431 = vmatprep.mubr.bf16.mxu0 0
        %1432 = vmatmul.mubr.bf16.gmra.mrb[0].mxu0 %v1098
        %v1433 = vpop.f32.mrb[0].mxu0
        %v1434 = vadd.f32 %v1369, %v1433
        %v1435 = vpop.f32.mrb[0].mxu0
        %v1436 = vpop.f32.mrb[0].mxu0
        %v1437 = vadd.f32 %v1372, %v1436
        %v1438 = vpop.f32.mrb[0].mxu0
        %1439 = vdwg.mxu0
        %v1440 = vadd.f32 %v1410, %v1151
        %v1441 = vadd.f32 %v1413, %v1152
        %v1442 = vadd.f32 %v1418, %v1153
        %v1443 = vadd.f32 %v1421, %v1154
        %v1444 = vadd.f32 %v1426, %v1155
        %v1445 = vadd.f32 %v1429, %v1156
        %v1446 = vadd.f32 %v1434, %v1157
        %v1447 = vadd.f32 %v1437, %v1158
        %v1448 = vmax.f32 %v1440, 0.0
        %v1449 = vmax.f32 %v1441, 0.0
        %v1450 = vmax.f32 %v1442, 0.0
        %v1451 = vmax.f32 %v1443, 0.0
        %v1452 = vmax.f32 %v1444, 0.0
        %v1453 = vmax.f32 %v1445, 0.0
        %v1454 = vmax.f32 %v1446, 0.0
        %v1455 = vmax.f32 %v1447, 0.0
        %v1456 = vpack.c.bf16 %v1449, %v1448
        %v1457 = vpack.c.bf16 %v1451, %v1450
        %v1458 = vpack.c.bf16 %v1453, %v1452
        %v1459 = vpack.c.bf16 %v1455, %v1454
        %v1464 = vunpack.c.l.b16 %v1456
        %v1465 = vunpack.c.h.b16 %v1456
        %v1466 = vunpack.c.l.b16 %v1457
        %v1467 = vunpack.c.h.b16 %v1457
        %v1468 = vunpack.c.l.b16 %v1458
        %v1469 = vunpack.c.h.b16 %v1458
        %v1470 = vunpack.c.l.b16 %v1459
        %v1471 = vunpack.c.h.b16 %v1459
        %v1472 = vpack.c.b16 %v1464, %v1464
        %v1473 = vpack.c.b16 %v1465, %v1465
        %v1474 = vpack.c.b16 %v1466, %v1466
        %v1475 = vpack.c.b16 %v1467, %v1467
        %v1476 = vpack.c.b16 %v1468, %v1468
        %v1477 = vpack.c.b16 %v1469, %v1469
        %v1478 = vpack.c.b16 %v1470, %v1470
        %v1479 = vpack.c.b16 %v1471, %v1471
        %1488 = vst [vmem:[%s272] sm:$0xf] %v1472
        %1489 = vst [vmem:[%s272 + $0x4] sm:$0xf] %v1473
        %1490 = vst [vmem:[%s272 + $0x8] sm:$0xf] %v1474
        %1491 = vst [vmem:[%s272 + $0xc] sm:$0xf] %v1475
        %1492 = vst [vmem:[%s272 + $0x10] sm:$0xf] %v1476
        %1493 = vst [vmem:[%s272 + $0x14] sm:$0xf] %v1477
        %1494 = vst [vmem:[%s272 + $0x18] sm:$0xf] %v1478
        %1495 = vst [vmem:[%s272 + $0x1c] sm:$0xf] %v1479
        %s1496 = sand.u32 %s141, 1
        %s1497 = scalar_lea.sflag [#allocation6], %s1496
        %s1498 = sand.u32 %s141, 1
        %s1499 = smul.addr %s1498, 32
        %s1500 = scalar_lea.vmem [#allocation10], %s1499
        // Predicated region
        $region53: #{tpu_custom_call.1} parent=39 // pred_check
          %p1501 = pneg %p151
        $region54: #{tpu_custom_call.1} parent=39 // pred_check_branch
          %1503 = sbr.rel (%p1501) target = $region56
        $region55: #{tpu_custom_call.1} parent=39 // pred_region
          %s1504 = smul.u32 4, %s23
          %s1506 = ssub.s32 512, 512
          %1507 = vsyncadd %s1497, %s1506
          %s1508 = smul.addr %s1504, 2
          %s1509 = smul.addr %s1508, 64
          %s1510 = scalar_lea.hbm %s5, %s1509
          %s1511 = sshll.u32 %s1500, 4
          %s1512 = int_to_ptr.vmem [resolvable:$true] %s1511
          %1517 = dma.vmem_to_hbm [thread:$0]  %s1512, 512, %s1510, %s1497, 64, 64, 4
        $region56: #{tpu_custom_call.1} parent=39 // pred_fallthru
          _
      $region40: #{tpu_custom_call.1} parent=5 // pred_fallthru
        _
      %p1518 = scmp.le.s32.totalorder 2, %s18
      // Predicated region
      $region57: #{tpu_custom_call.1} parent=5 // pred_check
        %p1519 = pneg %p1518
      $region58: #{tpu_custom_call.1} parent=5 // pred_check_branch
        %1521 = sbr.rel (%p1519) target = $region60
      $region59: #{tpu_custom_call.1} parent=5 // pred_region
        %s1522 = ssub.s32 %s18, 2
        // Predicated region
        $region61: #{tpu_custom_call.1} parent=59 // pred_check
          %p1523 = pneg %p157
        $region62: #{tpu_custom_call.1} parent=59 // pred_check_branch
          %1525 = sbr.rel (%p1523) target = $region64
        $region63: #{tpu_custom_call.1} parent=59 // pred_region
          %s1526 = sand.u32 %s142, 1
          %s1527 = scalar_lea.sflag [#allocation6], %s1526
          %s1528 = sand.u32 %s142, 1
          %s1529 = smul.addr %s1528, 32
          %s1530 = scalar_lea.vmem [#allocation10], %s1529
          %1531 = dma.done %s1527, 512
        $region64: #{tpu_custom_call.1} parent=59 // pred_fallthru
          _
      $region60: #{tpu_custom_call.1} parent=5 // pred_fallthru
        _
    $region6: #{tpu_custom_call.1} parent=1 // loop_footer
      %s22 = sadd.s32 1, %s18
    $region7: #{tpu_custom_call.1} parent=1 // loop_footer_branch
      %17 = sbr.rel target = $region3
    $region8: #{tpu_custom_call.1} parent=1 // loop_exit
      _
    %1532 = vsyncpa [#allocation5], 1
    %s1533 = scalar_lea.sflag [#allocation5], 1
    %1534 = vsyncpa %s1533, 1
    %1535 = vsyncpa [#allocation8], 1
    %1536 = vsyncpa [#allocation6], 1
    %s1537 = scalar_lea.sflag [#allocation6], 1
    %1538 = vsyncpa %s1537, 1

</llo_original>
